<compile_context>
chip_gen: v6e
topology: v6e:2x2x1
jax: 0.10.0
libtpu: 0.0.40
codegen_flags: <defaults>
</compile_context>

<pallas_src>
import functools

import jax
import jax.numpy as jnp
from jax.experimental import pallas as pl
from jax.experimental.pallas import tpu as pltpu

LANES = 128      # lane-dense padded logit width
K_PAD = 32       # im2col contraction dim (C*9 = 27) padded to a sublane multiple
SUBLANES = 8     # sublane alignment for the pooled-batch dimension


def _round_up(x, m):
    return (x + m - 1) // m * m


# ----------------------------------------------------------------------------
# Fused Pallas kernel
# ----------------------------------------------------------------------------
def fused_kernel(p_ref, pool_ref, wc_ref, bc_ref, w1_ref, b1_ref,
                 w2_ref, b2_ref, o_ref):
    """conv-stem + ReLU + global-avg-pool + both MLP heads, fully fused.

    p_ref:    (B*HW, K_PAD)   bf16  im2col patches, zero-padded K
    pool_ref: (B_PAD, B*HW)   bf16  block-diag mean-pool matrix (1/HW), 0-pad rows
    wc_ref:   (K_PAD, F)      bf16  conv weight (flattened, zero-padded rows)
    bc_ref:   (1, F)          f32   conv bias
    w1_ref:   (F, 2H)         bf16  [fruit_w1.T | state_w1.T]
    b1_ref:   (1, 2H)         f32
    w2_ref:   (2H, 128)       bf16  block-diag [fruit_w2.T ; state_w2.T], 0-pad
    b2_ref:   (1, 128)        f32
    o_ref:    (B_PAD, 128)    f32   lane-dense, sublane-aligned padded logits
    """
    # conv-as-matmul on the whole batch: (B*HW, K) @ (K, F) -> f32
    conv = jnp.dot(p_ref[...], wc_ref[...], preferred_element_type=jnp.float32)
    act = jnp.maximum(conv + bc_ref[...], 0.0)

    # global average pool through the MXU: (B_PAD, B*HW) @ (B*HW, F) -> (B_PAD, F)
    feats = jnp.dot(pool_ref[...], act.astype(jnp.bfloat16),
                    preferred_element_type=jnp.float32)

    # merged first layer of both heads: (B_PAD, F) @ (F, 2H)
    h = jnp.dot(feats.astype(jnp.bfloat16), w1_ref[...],
                preferred_element_type=jnp.float32)
    h = jnp.maximum(h + b1_ref[...], 0.0)

    # merged block-diagonal second layer, 128-lane padded output
    o = jnp.dot(h.astype(jnp.bfloat16), w2_ref[...],
                preferred_element_type=jnp.float32)
    o_ref[...] = o + b2_ref[...]


# ----------------------------------------------------------------------------
# Wrappers
# ----------------------------------------------------------------------------
def im2col_3x3(x):
    """x: [B, C, H, W] (NCHW) -> patches [B, H*W, C*3*3], padding=1, stride=1.

    Column order is (C, kh, kw), matching w_conv.reshape(F, C*9).
    """
    B, C, H, W = x.shape
    xp = jnp.pad(x, ((0, 0), (0, 0), (1, 1), (1, 1)))
    pieces = [xp[:, :, dy:dy + H, dx:dx + W] for dy in range(3) for dx in range(3)]
    p = jnp.stack(pieces, axis=1)          # [B, 9, C, H, W]
    p = p.transpose(0, 3, 4, 2, 1)         # [B, H, W, C, 9]
    return p.reshape(B, H * W, C * 9)


def prepare_params(params):
    """One-time layout plumbing: transpose / concatenate / pad / cast weights."""
    F, C = params["w_conv"].shape[0], params["w_conv"].shape[1]
    H = params["fw1"].shape[0]
    nf = params["fw2"].shape[0]
    ns = params["sw2"].shape[0]
    assert nf + ns <= LANES, "padded logit width exceeded"
    K = C * 9

    # conv weight: [F, C, 3, 3] -> [K_PAD, F], zero-padded rows, bf16
    wc = params["w_conv"].reshape(F, K).T
    wc = jnp.pad(wc, ((0, K_PAD - K), (0, 0))).astype(jnp.bfloat16)
    bc = params["b_conv"].reshape(1, F).astype(jnp.float32)

    # merged first layer: [F, 2H]
    w1 = jnp.concatenate([params["fw1"].T, params["sw1"].T], axis=1).astype(jnp.bfloat16)
    b1 = jnp.concatenate([params["fb1"], params["sb1"]]).reshape(1, 2 * H).astype(jnp.float32)

    # merged block-diagonal second layer: [2H, 128] (lane-dense)
    w2 = jnp.zeros((2 * H, LANES), jnp.float32)
    w2 = w2.at[:H, :nf].set(params["fw2"].T)
    w2 = w2.at[H:, nf:nf + ns].set(params["sw2"].T)
    w2 = w2.astype(jnp.bfloat16)
    b2 = jnp.zeros((1, LANES), jnp.float32)
    b2 = b2.at[0, :nf].set(params["fb2"])
    b2 = b2.at[0, nf:nf + ns].set(params["sb2"])

    return {"wc": wc, "bc": bc, "w1": w1, "b1": b1, "w2": w2, "b2": b2}


@functools.partial(jax.jit, static_argnums=(2, 3))
def fruit_classifier_forward(x, prep, num_fruit, num_state):
    """Full forward: x [B, 3, H, W] -> (fruit_logits [B,nf], state_logits [B,ns])."""
    B, C, Himg, Wimg = x.shape
    HW = Himg * Wimg
    F = prep["bc"].shape[1]
    H2 = prep["w1"].shape[1]
    B_pad = _round_up(max(B, SUBLANES), SUBLANES)   # sublane-aligned pooled batch

    patches = im2col_3x3(x)                                     # [B, HW, C*9]
    K = patches.shape[-1]
    patches = jnp.pad(patches, ((0, 0), (0, 0), (0, K_PAD - K)))
    patches = patches.reshape(B * HW, K_PAD).astype(jnp.bfloat16)

    # block-diagonal mean-pool matrix: feats[b] = mean over the HW rows of
    # image b; rows B..B_pad-1 are zero (padding).
    pool = jnp.kron(jnp.eye(B, dtype=jnp.float32),
                    jnp.full((1, HW), 1.0 / HW, jnp.float32))
    pool = jnp.pad(pool, ((0, B_pad - B), (0, 0))).astype(jnp.bfloat16)

    out = pl.pallas_call(
        fused_kernel,
        out_shape=jax.ShapeDtypeStruct((B_pad, LANES), jnp.float32),
        grid_spec=pltpu.PrefetchScalarGridSpec(
            num_scalar_prefetch=0,
            grid=(1,),
            in_specs=[
                pl.BlockSpec((B * HW, K_PAD), lambda i: (0, 0)),
                pl.BlockSpec((B_pad, B * HW), lambda i: (0, 0)),
                pl.BlockSpec((K_PAD, F), lambda i: (0, 0)),
                pl.BlockSpec((1, F), lambda i: (0, 0)),
                pl.BlockSpec((F, H2), lambda i: (0, 0)),
                pl.BlockSpec((1, H2), lambda i: (0, 0)),
                pl.BlockSpec((H2, LANES), lambda i: (0, 0)),
                pl.BlockSpec((1, LANES), lambda i: (0, 0)),
            ],
            out_specs=pl.BlockSpec((B_pad, LANES), lambda i: (0, 0)),
        ),
        compiler_params=pltpu.CompilerParams(
            dimension_semantics=("arbitrary",)),
    )(patches, pool, prep["wc"], prep["bc"], prep["w1"], prep["b1"],
      prep["w2"], prep["b2"])

    fruit_logits = out[:B, :num_fruit]
    state_logits = out[:B, num_fruit:num_fruit + num_state]
    return fruit_logits, state_logits


# ----------------------------------------------------------------------------
# Deterministic parameter init + demo
# ----------------------------------------------------------------------------
def init_params(key, in_ch, feature_dim, hidden, num_fruit, num_state):
    ks = jax.random.split(key, 10)
    s = 0.05
    return {
        # backbone stand-in conv: [F, C, 3, 3] (PyTorch layout)
        "w_conv": s * jax.random.normal(ks[0], (feature_dim, in_ch, 3, 3), jnp.float32),
        "b_conv": s * jax.random.normal(ks[1], (feature_dim,), jnp.float32),
        # fruit head: Linear(F, hidden), Linear(hidden, num_fruit)
        "fw1": s * jax.random.normal(ks[2], (hidden, feature_dim), jnp.float32),
        "fb1": s * jax.random.normal(ks[3], (hidden,), jnp.float32),
        "fw2": s * jax.random.normal(ks[4], (num_fruit, hidden), jnp.float32),
        "fb2": s * jax.random.normal(ks[5], (num_fruit,), jnp.float32),
        # state head: Linear(F, hidden), Linear(hidden, num_state)
        "sw1": s * jax.random.normal(ks[6], (hidden, feature_dim), jnp.float32),
        "sb1": s * jax.random.normal(ks[7], (hidden,), jnp.float32),
        "sw2": s * jax.random.normal(ks[8], (num_state, hidden), jnp.float32),
        "sb2": s * jax.random.normal(ks[9], (num_state,), jnp.float32),
    }


if __name__ == "__main__":
    key = jax.random.PRNGKey(0)
    k_x, k_p = jax.random.split(key)

    # Small shapes consistent with the module's forward contract ([B, 3, H, W]).
    B, C, Himg, Wimg = 2, 3, 16, 16
    FEATURE_DIM = 256                         # stand-in for efficientnet feature_dim
    HIDDEN = 512                              # head hidden size (as in the module)
    NUM_FRUIT, NUM_STATE = 10, 2

    x = jax.random.normal(k_x, (B, C, Himg, Wimg), jnp.float32)
    params = init_params(k_p, C, FEATURE_DIM, HIDDEN, NUM_FRUIT, NUM_STATE)
    prep = prepare_params(params)

    fruit_logits, state_logits = fruit_classifier_forward(x, prep, NUM_FRUIT, NUM_STATE)
    jax.block_until_ready((fruit_logits, state_logits))

    assert fruit_logits.shape == (B, NUM_FRUIT)
    assert state_logits.shape == (B, NUM_STATE)

    # Cross-check against a pure-JAX reference that quantizes at the same
    # points the kernel does (bf16 matmul operands, f32 accumulation/epilogue).
    def ref_forward(x, p):
        bf = lambda a: a.astype(jnp.bfloat16).astype(jnp.float32)
        conv = jax.lax.conv_general_dilated(
            bf(x), bf(p["w_conv"]), window_strides=(1, 1), padding="SAME",
            dimension_numbers=("NCHW", "OIHW", "NCHW"))
        act = jnp.maximum(conv + p["b_conv"][None, :, None, None], 0.0)
        feats = bf(act).mean(axis=(2, 3))

        def head(f, w1, b1, w2, b2):
            h = jnp.maximum(bf(f) @ bf(w1).T + b1, 0.0)
            return bf(h) @ bf(w2).T + b2

        return (head(feats, p["fw1"], p["fb1"], p["fw2"], p["fb2"]),
                head(feats, p["sw1"], p["sb1"], p["sw2"], p["sb2"]))

    rf, rs = ref_forward(x, params)
    assert jnp.allclose(fruit_logits, rf, atol=5e-3, rtol=5e-3)
    assert jnp.allclose(state_logits, rs, atol=5e-3, rtol=5e-3)

    print("KERNEL_OK")
</pallas_src>

<mosaic_0001>
module attributes {stable_mosaic.version = 11 : i64} {
  func.func @fused_kernel(%arg0: i32, %arg1: memref<512x32xbf16, #tpu.memory_space<vmem>>, %arg2: memref<8x512xbf16, #tpu.memory_space<vmem>>, %arg3: memref<32x256xbf16, #tpu.memory_space<vmem>>, %arg4: memref<1x256xf32, #tpu.memory_space<vmem>>, %arg5: memref<256x1024xbf16, #tpu.memory_space<vmem>>, %arg6: memref<1x1024xf32, #tpu.memory_space<vmem>>, %arg7: memref<1024x128xbf16, #tpu.memory_space<vmem>>, %arg8: memref<1x128xf32, #tpu.memory_space<vmem>>, %arg9: memref<8x128xf32, #tpu.memory_space<vmem>>) attributes {dimension_semantics = [#tpu.dimension_semantics<arbitrary>], iteration_bounds = array<i64: 1>, scalar_prefetch = 0 : i64, scratch_operands = 0 : i64, tpu.core_type = #tpu.core_type<tc>, window_params = [{pipeline_mode = #tpu.pipeline_mode<synchronous>, transform_indices = @transform_0, window_bounds = array<i64: 512, 32>}, {pipeline_mode = #tpu.pipeline_mode<synchronous>, transform_indices = @transform_1, window_bounds = array<i64: 8, 512>}, {pipeline_mode = #tpu.pipeline_mode<synchronous>, transform_indices = @transform_2, window_bounds = array<i64: 32, 256>}, {pipeline_mode = #tpu.pipeline_mode<synchronous>, transform_indices = @transform_3, window_bounds = array<i64: 1, 256>}, {pipeline_mode = #tpu.pipeline_mode<synchronous>, transform_indices = @transform_4, window_bounds = array<i64: 256, 1024>}, {pipeline_mode = #tpu.pipeline_mode<synchronous>, transform_indices = @transform_5, window_bounds = array<i64: 1, 1024>}, {pipeline_mode = #tpu.pipeline_mode<synchronous>, transform_indices = @transform_6, window_bounds = array<i64: 1024, 128>}, {pipeline_mode = #tpu.pipeline_mode<synchronous>, transform_indices = @transform_7, window_bounds = array<i64: 1, 128>}, {pipeline_mode = #tpu.pipeline_mode<synchronous>, transform_indices = @transform_8, window_bounds = array<i64: 8, 128>}]} {
    %c0 = arith.constant 0 : index
    %c0_0 = arith.constant 0 : index
    %0 = vector.load %arg1[%c0, %c0_0] : memref<512x32xbf16, #tpu.memory_space<vmem>>, vector<512x32xbf16>
    %c0_1 = arith.constant 0 : index
    %c0_2 = arith.constant 0 : index
    %1 = vector.load %arg3[%c0_1, %c0_2] : memref<32x256xbf16, #tpu.memory_space<vmem>>, vector<32x256xbf16>
    %cst = arith.constant dense<0.000000e+00> : vector<512x256xf32>
    %2 = tpu.matmul %0, %1, %cst {dimension_numbers = #tpu.dot_dimension_numbers<[1], [0], [0], [1], [0, 0, 1, 1], [], []>} : vector<512x32xbf16>, vector<32x256xbf16>, vector<512x256xf32> -> vector<512x256xf32>
    %c0_3 = arith.constant 0 : index
    %c0_4 = arith.constant 0 : index
    %3 = vector.load %arg4[%c0_3, %c0_4] : memref<1x256xf32, #tpu.memory_space<vmem>>, vector<1x256xf32>
    %4 = vector.broadcast %3 : vector<1x256xf32> to vector<512x256xf32>
    %5 = arith.addf %2, %4 : vector<512x256xf32>
    %cst_5 = arith.constant 0.000000e+00 : f32
    %6 = vector.broadcast %cst_5 : f32 to vector<512x256xf32>
    %7 = arith.maximumf %5, %6 : vector<512x256xf32>
    %c0_6 = arith.constant 0 : index
    %c0_7 = arith.constant 0 : index
    %8 = vector.load %arg2[%c0_6, %c0_7] : memref<8x512xbf16, #tpu.memory_space<vmem>>, vector<8x512xbf16>
    %9 = arith.truncf %7 : vector<512x256xf32> to vector<512x256xbf16>
    %cst_8 = arith.constant dense<0.000000e+00> : vector<8x256xf32>
    %10 = tpu.matmul %8, %9, %cst_8 {dimension_numbers = #tpu.dot_dimension_numbers<[1], [0], [0], [1], [0, 0, 1, 1], [], []>} : vector<8x512xbf16>, vector<512x256xbf16>, vector<8x256xf32> -> vector<8x256xf32>
    %11 = arith.truncf %10 : vector<8x256xf32> to vector<8x256xbf16>
    %c0_9 = arith.constant 0 : index
    %c0_10 = arith.constant 0 : index
    %12 = vector.load %arg5[%c0_9, %c0_10] : memref<256x1024xbf16, #tpu.memory_space<vmem>>, vector<256x1024xbf16>
    %cst_11 = arith.constant dense<0.000000e+00> : vector<8x1024xf32>
    %13 = tpu.matmul %11, %12, %cst_11 {dimension_numbers = #tpu.dot_dimension_numbers<[1], [0], [0], [1], [0, 0, 1, 1], [], []>} : vector<8x256xbf16>, vector<256x1024xbf16>, vector<8x1024xf32> -> vector<8x1024xf32>
    %c0_12 = arith.constant 0 : index
    %c0_13 = arith.constant 0 : index
    %14 = vector.load %arg6[%c0_12, %c0_13] : memref<1x1024xf32, #tpu.memory_space<vmem>>, vector<1x1024xf32>
    %15 = vector.broadcast %14 : vector<1x1024xf32> to vector<8x1024xf32>
    %16 = arith.addf %13, %15 : vector<8x1024xf32>
    %cst_14 = arith.constant 0.000000e+00 : f32
    %17 = vector.broadcast %cst_14 : f32 to vector<8x1024xf32>
    %18 = arith.maximumf %16, %17 : vector<8x1024xf32>
    %19 = arith.truncf %18 : vector<8x1024xf32> to vector<8x1024xbf16>
    %c0_15 = arith.constant 0 : index
    %c0_16 = arith.constant 0 : index
    %20 = vector.load %arg7[%c0_15, %c0_16] : memref<1024x128xbf16, #tpu.memory_space<vmem>>, vector<1024x128xbf16>
    %cst_17 = arith.constant dense<0.000000e+00> : vector<8x128xf32>
    %21 = tpu.matmul %19, %20, %cst_17 {dimension_numbers = #tpu.dot_dimension_numbers<[1], [0], [0], [1], [0, 0, 1, 1], [], []>} : vector<8x1024xbf16>, vector<1024x128xbf16>, vector<8x128xf32> -> vector<8x128xf32>
    %c0_18 = arith.constant 0 : index
    %c0_19 = arith.constant 0 : index
    %22 = vector.load %arg8[%c0_18, %c0_19] : memref<1x128xf32, #tpu.memory_space<vmem>>, vector<1x128xf32>
    %23 = vector.broadcast %22 : vector<1x128xf32> to vector<8x128xf32>
    %24 = arith.addf %21, %23 : vector<8x128xf32>
    %c0_20 = arith.constant 0 : index
    %c0_21 = arith.constant 0 : index
    %25 = vector.load %arg9[%c0_20, %c0_21] : memref<8x128xf32, #tpu.memory_space<vmem>>, vector<8x128xf32>
    tpu.vector_store %arg9[%c0_20, %c0_21], %24 {strides = array<i32>} : memref<8x128xf32, #tpu.memory_space<vmem>>, vector<8x128xf32>,
    return
  }
  func.func @transform_0(%arg0: i32) -> (i32, i32) {
    %c0_i32 = arith.constant 0 : i32
    %c0_i32_0 = arith.constant 0 : i32
    %c0_i32_1 = arith.constant 0 : i32
    return %c0_i32, %c0_i32_0 : i32, i32
  }
  func.func @transform_1(%arg0: i32) -> (i32, i32) {
    %c0_i32 = arith.constant 0 : i32
    %c0_i32_0 = arith.constant 0 : i32
    %c0_i32_1 = arith.constant 0 : i32
    return %c0_i32, %c0_i32_0 : i32, i32
  }
  func.func @transform_2(%arg0: i32) -> (i32, i32) {
    %c0_i32 = arith.constant 0 : i32
    %c0_i32_0 = arith.constant 0 : i32
    %c0_i32_1 = arith.constant 0 : i32
    return %c0_i32, %c0_i32_0 : i32, i32
  }
  func.func @transform_3(%arg0: i32) -> (i32, i32) {
    %c0_i32 = arith.constant 0 : i32
    %c0_i32_0 = arith.constant 0 : i32
    %c0_i32_1 = arith.constant 0 : i32
    return %c0_i32, %c0_i32_0 : i32, i32
  }
  func.func @transform_4(%arg0: i32) -> (i32, i32) {
    %c0_i32 = arith.constant 0 : i32
    %c0_i32_0 = arith.constant 0 : i32
    %c0_i32_1 = arith.constant 0 : i32
    return %c0_i32, %c0_i32_0 : i32, i32
  }
  func.func @transform_5(%arg0: i32) -> (i32, i32) {
    %c0_i32 = arith.constant 0 : i32
    %c0_i32_0 = arith.constant 0 : i32
    %c0_i32_1 = arith.constant 0 : i32
    return %c0_i32, %c0_i32_0 : i32, i32
  }
  func.func @transform_6(%arg0: i32) -> (i32, i32) {
    %c0_i32 = arith.constant 0 : i32
    %c0_i32_0 = arith.constant 0 : i32
    %c0_i32_1 = arith.constant 0 : i32
    return %c0_i32, %c0_i32_0 : i32, i32
  }
  func.func @transform_7(%arg0: i32) -> (i32, i32) {
    %c0_i32 = arith.constant 0 : i32
    %c0_i32_0 = arith.constant 0 : i32
    %c0_i32_1 = arith.constant 0 : i32
    return %c0_i32, %c0_i32_0 : i32, i32
  }
  func.func @transform_8(%arg0: i32) -> (i32, i32) {
    %c0_i32 = arith.constant 0 : i32
    %c0_i32_0 = arith.constant 0 : i32
    %c0_i32_1 = arith.constant 0 : i32
    return %c0_i32, %c0_i32_0 : i32, i32
  }
}

</mosaic_0001>

<llo_original>
// kernel: fruit_classifier_forward.1
$region0: #{fruit_classifier_forward.1}
  #allocation0 [shape = 'u32[]', space=smem, size = 0x4, offset = 0x4, fixed_abs, tag = 'smem constant byte address 0x4 - core index']
  #allocation1 [shape = 'u32[144,128]{1,0:T(1,128)}', space=vmem, size = 0x12000, scoped, tag = 'internal scratch']
  %s0 = inlined_call_operand.vmem [shape: bf16[512,32], index: 0, kind: input, shape index: {}]
  %s1 = inlined_call_operand.vmem [shape: bf16[8,512], index: 1, kind: input, shape index: {}]
  %s2 = inlined_call_operand.vmem [shape: bf16[32,256], index: 2, kind: input, shape index: {}]
  %s3 = inlined_call_operand.vmem [shape: f32[1,256], index: 3, kind: input, shape index: {}]
  %s4 = inlined_call_operand.vmem [shape: bf16[256,1024], index: 4, kind: input, shape index: {}]
  %s5 = inlined_call_operand.vmem [shape: f32[1,1024], index: 5, kind: input, shape index: {}]
  %s6 = inlined_call_operand.vmem [shape: bf16[1024,128], index: 6, kind: input, shape index: {}]
  %s7 = inlined_call_operand.vmem [shape: f32[1,128], index: 7, kind: input, shape index: {}]
  %s8 = inlined_call_operand.vmem [shape: f32[8,128], index: 8, kind: output, shape index: {}]
  %s9 = sld [smem:[#allocation0]]
  $region42: #{fruit_classifier_forward.1} parent=0
    _
  %s11 = ssub.s32 1, %s9
  %s12 = scalar_select 0, %s11, %s9
  // Predicated region
  $region2: #{fruit_classifier_forward.1} parent=0 // pred_check
    _
  $region3: #{fruit_classifier_forward.1} parent=0 // pred_check_branch
    %14 = sbr.rel (0) target = $region5
  $region4: #{fruit_classifier_forward.1} parent=0 // pred_region
    _
  $region5: #{fruit_classifier_forward.1} parent=0 // pred_fallthru
    _
  // Predicated region
  $region6: #{fruit_classifier_forward.1} parent=0 // pred_check
    _
  $region7: #{fruit_classifier_forward.1} parent=0 // pred_check_branch
    %16 = sbr.rel (0) target = $region9
  $region8: #{fruit_classifier_forward.1} parent=0 // pred_region
    _
  $region9: #{fruit_classifier_forward.1} parent=0 // pred_fallthru
    _
  // Predicated region
  $region10: #{fruit_classifier_forward.1} parent=0 // pred_check
    _
  $region11: #{fruit_classifier_forward.1} parent=0 // pred_check_branch
    %18 = sbr.rel (0) target = $region13
  $region12: #{fruit_classifier_forward.1} parent=0 // pred_region
    _
  $region13: #{fruit_classifier_forward.1} parent=0 // pred_fallthru
    _
  // Predicated region
  $region14: #{fruit_classifier_forward.1} parent=0 // pred_check
    _
  $region15: #{fruit_classifier_forward.1} parent=0 // pred_check_branch
    %20 = sbr.rel (0) target = $region17
  $region16: #{fruit_classifier_forward.1} parent=0 // pred_region
    _
  $region17: #{fruit_classifier_forward.1} parent=0 // pred_fallthru
    _
  // Predicated region
  $region18: #{fruit_classifier_forward.1} parent=0 // pred_check
    _
  $region19: #{fruit_classifier_forward.1} parent=0 // pred_check_branch
    %22 = sbr.rel (0) target = $region21
  $region20: #{fruit_classifier_forward.1} parent=0 // pred_region
    _
  $region21: #{fruit_classifier_forward.1} parent=0 // pred_fallthru
    _
  // Predicated region
  $region22: #{fruit_classifier_forward.1} parent=0 // pred_check
    _
  $region23: #{fruit_classifier_forward.1} parent=0 // pred_check_branch
    %24 = sbr.rel (0) target = $region25
  $region24: #{fruit_classifier_forward.1} parent=0 // pred_region
    _
  $region25: #{fruit_classifier_forward.1} parent=0 // pred_fallthru
    _
  // Predicated region
  $region26: #{fruit_classifier_forward.1} parent=0 // pred_check
    _
  $region27: #{fruit_classifier_forward.1} parent=0 // pred_check_branch
    %26 = sbr.rel (0) target = $region29
  $region28: #{fruit_classifier_forward.1} parent=0 // pred_region
    _
  $region29: #{fruit_classifier_forward.1} parent=0 // pred_fallthru
    _
  // Predicated region
  $region30: #{fruit_classifier_forward.1} parent=0 // pred_check
    _
  $region31: #{fruit_classifier_forward.1} parent=0 // pred_check_branch
    %28 = sbr.rel (0) target = $region33
  $region32: #{fruit_classifier_forward.1} parent=0 // pred_region
    _
  $region33: #{fruit_classifier_forward.1} parent=0 // pred_fallthru
    _
  %v30 = vld [vmem:[%s0] sm:$0xf]
  %v31 = vld [vmem:[%s0 + $0x4] sm:$0xf]
  %v32 = vld [vmem:[%s0 + $0x8] sm:$0xf]
  %v33 = vld [vmem:[%s0 + $0xc] sm:$0xf]
  %v34 = vld [vmem:[%s0 + $0x10] sm:$0xf]
  %v35 = vld [vmem:[%s0 + $0x14] sm:$0xf]
  %v36 = vld [vmem:[%s0 + $0x18] sm:$0xf]
  %v37 = vld [vmem:[%s0 + $0x1c] sm:$0xf]
  %v38 = vld [vmem:[%s0 + $0x20] sm:$0xf]
  %v39 = vld [vmem:[%s0 + $0x24] sm:$0xf]
  %v40 = vld [vmem:[%s0 + $0x28] sm:$0xf]
  %v41 = vld [vmem:[%s0 + $0x2c] sm:$0xf]
  %v42 = vld [vmem:[%s0 + $0x30] sm:$0xf]
  %v43 = vld [vmem:[%s0 + $0x34] sm:$0xf]
  %v44 = vld [vmem:[%s0 + $0x38] sm:$0xf]
  %v45 = vld [vmem:[%s0 + $0x3c] sm:$0xf]
  %v46 = vld [vmem:[%s0 + $0x40] sm:$0xf]
  %v47 = vld [vmem:[%s0 + $0x44] sm:$0xf]
  %v48 = vld [vmem:[%s0 + $0x48] sm:$0xf]
  %v49 = vld [vmem:[%s0 + $0x4c] sm:$0xf]
  %v50 = vld [vmem:[%s0 + $0x50] sm:$0xf]
  %v51 = vld [vmem:[%s0 + $0x54] sm:$0xf]
  %v52 = vld [vmem:[%s0 + $0x58] sm:$0xf]
  %v53 = vld [vmem:[%s0 + $0x5c] sm:$0xf]
  %v54 = vld [vmem:[%s0 + $0x60] sm:$0xf]
  %v55 = vld [vmem:[%s0 + $0x64] sm:$0xf]
  %v56 = vld [vmem:[%s0 + $0x68] sm:$0xf]
  %v57 = vld [vmem:[%s0 + $0x6c] sm:$0xf]
  %v58 = vld [vmem:[%s0 + $0x70] sm:$0xf]
  %v59 = vld [vmem:[%s0 + $0x74] sm:$0xf]
  %v60 = vld [vmem:[%s0 + $0x78] sm:$0xf]
  %v61 = vld [vmem:[%s0 + $0x7c] sm:$0xf]
  %v62 = vld [vmem:[%s0 + $0x80] sm:$0xf]
  %v63 = vld [vmem:[%s0 + $0x84] sm:$0xf]
  %v64 = vld [vmem:[%s0 + $0x88] sm:$0xf]
  %v65 = vld [vmem:[%s0 + $0x8c] sm:$0xf]
  %v66 = vld [vmem:[%s0 + $0x90] sm:$0xf]
  %v67 = vld [vmem:[%s0 + $0x94] sm:$0xf]
  %v68 = vld [vmem:[%s0 + $0x98] sm:$0xf]
  %v69 = vld [vmem:[%s0 + $0x9c] sm:$0xf]
  %v70 = vld [vmem:[%s0 + $0xa0] sm:$0xf]
  %v71 = vld [vmem:[%s0 + $0xa4] sm:$0xf]
  %v72 = vld [vmem:[%s0 + $0xa8] sm:$0xf]
  %v73 = vld [vmem:[%s0 + $0xac] sm:$0xf]
  %v74 = vld [vmem:[%s0 + $0xb0] sm:$0xf]
  %v75 = vld [vmem:[%s0 + $0xb4] sm:$0xf]
  %v76 = vld [vmem:[%s0 + $0xb8] sm:$0xf]
  %v77 = vld [vmem:[%s0 + $0xbc] sm:$0xf]
  %v78 = vld [vmem:[%s0 + $0xc0] sm:$0xf]
  %v79 = vld [vmem:[%s0 + $0xc4] sm:$0xf]
  %v80 = vld [vmem:[%s0 + $0xc8] sm:$0xf]
  %v81 = vld [vmem:[%s0 + $0xcc] sm:$0xf]
  %v82 = vld [vmem:[%s0 + $0xd0] sm:$0xf]
  %v83 = vld [vmem:[%s0 + $0xd4] sm:$0xf]
  %v84 = vld [vmem:[%s0 + $0xd8] sm:$0xf]
  %v85 = vld [vmem:[%s0 + $0xdc] sm:$0xf]
  %v86 = vld [vmem:[%s0 + $0xe0] sm:$0xf]
  %v87 = vld [vmem:[%s0 + $0xe4] sm:$0xf]
  %v88 = vld [vmem:[%s0 + $0xe8] sm:$0xf]
  %v89 = vld [vmem:[%s0 + $0xec] sm:$0xf]
  %v90 = vld [vmem:[%s0 + $0xf0] sm:$0xf]
  %v91 = vld [vmem:[%s0 + $0xf4] sm:$0xf]
  %v92 = vld [vmem:[%s0 + $0xf8] sm:$0xf]
  %v93 = vld [vmem:[%s0 + $0xfc] sm:$0xf]
  %v94 = vld [vmem:[%s2] sm:$0xff]
  %v95 = vld [vmem:[%s2 + $0x8] sm:$0xff]
  %v96 = vld [vmem:[%s2 + $0x10] sm:$0xff]
  %v97 = vld [vmem:[%s2 + $0x18] sm:$0xff]
  %v98 = vld [vmem:[%s3] sm:$0x3]
  %v100 = vlaneseq
  %v101 = vshrl.u32 %v100, 7
  %v102 = vsub.s32 0, %v101
  %v103 = vrot.slane %v98, %v102
  %v104 = vlaneseq
  %v105 = vshrl.u32 %v104, 7
  %v106 = vsub.s32 1, %v105
  %v107 = vrot.slane %v98, %v106
  %v174 = vunpack.c.l.b16 %v30
  %v175 = vunpack.c.l.b16 %v31
  %v176 = vunpack.c.l.b16 %v32
  %v177 = vunpack.c.l.b16 %v33
  %v178 = vunpack.c.l.b16 %v34
  %v179 = vunpack.c.l.b16 %v35
  %v180 = vunpack.c.l.b16 %v36
  %v181 = vunpack.c.l.b16 %v37
  %v182 = vunpack.c.l.b16 %v38
  %v183 = vunpack.c.l.b16 %v39
  %v184 = vunpack.c.l.b16 %v40
  %v185 = vunpack.c.l.b16 %v41
  %v186 = vunpack.c.l.b16 %v42
  %v187 = vunpack.c.l.b16 %v43
  %v188 = vunpack.c.l.b16 %v44
  %v189 = vunpack.c.l.b16 %v45
  %v190 = vunpack.c.l.b16 %v46
  %v191 = vunpack.c.l.b16 %v47
  %v192 = vunpack.c.l.b16 %v48
  %v193 = vunpack.c.l.b16 %v49
  %v194 = vunpack.c.l.b16 %v50
  %v195 = vunpack.c.l.b16 %v51
  %v196 = vunpack.c.l.b16 %v52
  %v197 = vunpack.c.l.b16 %v53
  %v198 = vunpack.c.l.b16 %v54
  %v199 = vunpack.c.l.b16 %v55
  %v200 = vunpack.c.l.b16 %v56
  %v201 = vunpack.c.l.b16 %v57
  %v202 = vunpack.c.l.b16 %v58
  %v203 = vunpack.c.l.b16 %v59
  %v204 = vunpack.c.l.b16 %v60
  %v205 = vunpack.c.l.b16 %v61
  %v206 = vunpack.c.l.b16 %v62
  %v207 = vunpack.c.l.b16 %v63
  %v208 = vunpack.c.l.b16 %v64
  %v209 = vunpack.c.l.b16 %v65
  %v210 = vunpack.c.l.b16 %v66
  %v211 = vunpack.c.l.b16 %v67
  %v212 = vunpack.c.l.b16 %v68
  %v213 = vunpack.c.l.b16 %v69
  %v214 = vunpack.c.l.b16 %v70
  %v215 = vunpack.c.l.b16 %v71
  %v216 = vunpack.c.l.b16 %v72
  %v217 = vunpack.c.l.b16 %v73
  %v218 = vunpack.c.l.b16 %v74
  %v219 = vunpack.c.l.b16 %v75
  %v220 = vunpack.c.l.b16 %v76
  %v221 = vunpack.c.l.b16 %v77
  %v222 = vunpack.c.l.b16 %v78
  %v223 = vunpack.c.l.b16 %v79
  %v224 = vunpack.c.l.b16 %v80
  %v225 = vunpack.c.l.b16 %v81
  %v226 = vunpack.c.l.b16 %v82
  %v227 = vunpack.c.l.b16 %v83
  %v228 = vunpack.c.l.b16 %v84
  %v229 = vunpack.c.l.b16 %v85
  %v230 = vunpack.c.l.b16 %v86
  %v231 = vunpack.c.l.b16 %v87
  %v232 = vunpack.c.l.b16 %v88
  %v233 = vunpack.c.l.b16 %v89
  %v234 = vunpack.c.l.b16 %v90
  %v235 = vunpack.c.l.b16 %v91
  %v236 = vunpack.c.l.b16 %v92
  %v237 = vunpack.c.l.b16 %v93
  %v238 = vpack.c.b16 %v175, %v174
  %v239 = vpack.c.b16 %v177, %v176
  %v240 = vpack.c.b16 %v179, %v178
  %v241 = vpack.c.b16 %v181, %v180
  %v242 = vpack.c.b16 %v183, %v182
  %v243 = vpack.c.b16 %v185, %v184
  %v244 = vpack.c.b16 %v187, %v186
  %v245 = vpack.c.b16 %v189, %v188
  %v246 = vpack.c.b16 %v191, %v190
  %v247 = vpack.c.b16 %v193, %v192
  %v248 = vpack.c.b16 %v195, %v194
  %v249 = vpack.c.b16 %v197, %v196
  %v250 = vpack.c.b16 %v199, %v198
  %v251 = vpack.c.b16 %v201, %v200
  %v252 = vpack.c.b16 %v203, %v202
  %v253 = vpack.c.b16 %v205, %v204
  %v254 = vpack.c.b16 %v207, %v206
  %v255 = vpack.c.b16 %v209, %v208
  %v256 = vpack.c.b16 %v211, %v210
  %v257 = vpack.c.b16 %v213, %v212
  %v258 = vpack.c.b16 %v215, %v214
  %v259 = vpack.c.b16 %v217, %v216
  %v260 = vpack.c.b16 %v219, %v218
  %v261 = vpack.c.b16 %v221, %v220
  %v262 = vpack.c.b16 %v223, %v222
  %v263 = vpack.c.b16 %v225, %v224
  %v264 = vpack.c.b16 %v227, %v226
  %v265 = vpack.c.b16 %v229, %v228
  %v266 = vpack.c.b16 %v231, %v230
  %v267 = vpack.c.b16 %v233, %v232
  %v268 = vpack.c.b16 %v235, %v234
  %v269 = vpack.c.b16 %v237, %v236
  %v274 = vunpack.c.l.b16 %v94
  %v275 = vunpack.c.h.b16 %v94
  %v276 = vunpack.c.l.b16 %v95
  %v277 = vunpack.c.h.b16 %v95
  %v278 = vunpack.c.l.b16 %v96
  %v279 = vunpack.c.h.b16 %v96
  %v280 = vunpack.c.l.b16 %v97
  %v281 = vunpack.c.h.b16 %v97
  %v282 = vpack.c.b16 %v276, %v274
  %v283 = vpack.c.b16 %v277, %v275
  %v284 = vpack.c.b16 %v280, %v278
  %v285 = vpack.c.b16 %v281, %v279
  %vm290 = vcmask 261120
  %v292 = vsel %vm290, %v238, 0
  %v295 = vsel %vm290, %v239, 0
  %v298 = vsel %vm290, %v240, 0
  %v301 = vsel %vm290, %v241, 0
  %v304 = vsel %vm290, %v242, 0
  %v307 = vsel %vm290, %v243, 0
  %v310 = vsel %vm290, %v244, 0
  %v313 = vsel %vm290, %v245, 0
  %v316 = vsel %vm290, %v246, 0
  %v319 = vsel %vm290, %v247, 0
  %v322 = vsel %vm290, %v248, 0
  %v325 = vsel %vm290, %v249, 0
  %v328 = vsel %vm290, %v250, 0
  %v331 = vsel %vm290, %v251, 0
  %v334 = vsel %vm290, %v252, 0
  %v337 = vsel %vm290, %v253, 0
  %v340 = vsel %vm290, %v254, 0
  %v343 = vsel %vm290, %v255, 0
  %v346 = vsel %vm290, %v256, 0
  %v349 = vsel %vm290, %v257, 0
  %v352 = vsel %vm290, %v258, 0
  %v355 = vsel %vm290, %v259, 0
  %v358 = vsel %vm290, %v260, 0
  %v361 = vsel %vm290, %v261, 0
  %v364 = vsel %vm290, %v262, 0
  %v367 = vsel %vm290, %v263, 0
  %v370 = vsel %vm290, %v264, 0
  %v373 = vsel %vm290, %v265, 0
  %v376 = vsel %vm290, %v266, 0
  %v379 = vsel %vm290, %v267, 0
  %v382 = vsel %vm290, %v268, 0
  %v385 = vsel %vm290, %v269, 0
  %387 = vmatprep.subr.bf16.mxu0 0
  %388 = vmatpush1.bf16.msra.mxu0 0
  %389 = vmatprep.subr.bf16.mxu0 0
  %390 = vmatpush1.bf16.msra.mxu0 0
  %391 = vmatprep.subr.bf16.mxu0 0
  %392 = vmatpush1.bf16.msra.mxu0 0
  %393 = vmatprep.subr.bf16.mxu0 0
  %394 = vmatpush1.bf16.msra.mxu0 0
  %395 = vmatprep.subr.bf16.mxu0 0
  %396 = vmatpush1.bf16.msra.mxu0 0
  %397 = vmatprep.subr.bf16.mxu0 0
  %398 = vmatpush1.bf16.msra.mxu0 0
  %399 = vmatprep.subr.bf16.mxu0 %v285
  %400 = vmatpush1.bf16.msra.mxu0 %v284
  %401 = vmatprep.subr.bf16.mxu0 %v283
  %402 = vmatpush1.bf16.msra.mxu0 %v282
  %403 = vmatprep.subr.bf16.mxu0 0
  %404 = vmatpush2.bf16.msra.mxu0 0
  %405 = vmatprep.subr.bf16.mxu0 0
  %406 = vmatpush2.bf16.msra.mxu0 0
  %407 = vmatprep.subr.bf16.mxu0 0
  %408 = vmatpush2.bf16.msra.mxu0 0
  %409 = vmatprep.subr.bf16.mxu0 0
  %410 = vmatpush2.bf16.msra.mxu0 0
  %411 = vmatprep.subr.bf16.mxu0 0
  %412 = vmatpush2.bf16.msra.mxu0 0
  %413 = vmatprep.subr.bf16.mxu0 0
  %414 = vmatpush2.bf16.msra.mxu0 0
  %415 = vmatprep.subr.bf16.mxu0 0
  %416 = vmatpush2.bf16.msra.mxu0 0
  %417 = vmatprep.subr.bf16.mxu0 0
  %418 = vmatpush2.bf16.msra.mxu0 0
  %419 = vmatprep.mubr.bf16.mxu0 0
  %420 = vmatmul.mubr.bf16.gmra.mxu0 %v292
  %v421 = vpop.f32.mrf.mxu0
  %v422 = vadd.f32 %v103, %v421
  %v423 = vpop.f32.mrf.mxu0
  %v424 = vadd.f32 %v107, %v423
  %v425 = vpop.f32.mrf.mxu0
  %v426 = vadd.f32 %v103, %v425
  %v427 = vpop.f32.mrf.mxu0
  %v428 = vadd.f32 %v107, %v427
  %429 = vmatprep.mubr.bf16.mxu0 0
  %430 = vmatmul.mubr.bf16.gmra.mxu0 %v295
  %v431 = vpop.f32.mrf.mxu0
  %v432 = vadd.f32 %v103, %v431
  %v433 = vpop.f32.mrf.mxu0
  %v434 = vadd.f32 %v107, %v433
  %v435 = vpop.f32.mrf.mxu0
  %v436 = vadd.f32 %v103, %v435
  %v437 = vpop.f32.mrf.mxu0
  %v438 = vadd.f32 %v107, %v437
  %439 = vmatprep.mubr.bf16.mxu0 0
  %440 = vmatmul.mubr.bf16.gmra.mxu0 %v298
  %v441 = vpop.f32.mrf.mxu0
  %v442 = vadd.f32 %v103, %v441
  %v443 = vpop.f32.mrf.mxu0
  %v444 = vadd.f32 %v107, %v443
  %v445 = vpop.f32.mrf.mxu0
  %v446 = vadd.f32 %v103, %v445
  %v447 = vpop.f32.mrf.mxu0
  %v448 = vadd.f32 %v107, %v447
  %449 = vmatprep.mubr.bf16.mxu0 0
  %450 = vmatmul.mubr.bf16.gmra.mxu0 %v301
  %v451 = vpop.f32.mrf.mxu0
  %v452 = vadd.f32 %v103, %v451
  %v453 = vpop.f32.mrf.mxu0
  %v454 = vadd.f32 %v107, %v453
  %v455 = vpop.f32.mrf.mxu0
  %v456 = vadd.f32 %v103, %v455
  %v457 = vpop.f32.mrf.mxu0
  %v458 = vadd.f32 %v107, %v457
  %459 = vmatprep.mubr.bf16.mxu0 0
  %460 = vmatmul.mubr.bf16.gmra.mxu0 %v304
  %v461 = vpop.f32.mrf.mxu0
  %v462 = vadd.f32 %v103, %v461
  %v463 = vpop.f32.mrf.mxu0
  %v464 = vadd.f32 %v107, %v463
  %v465 = vpop.f32.mrf.mxu0
  %v466 = vadd.f32 %v103, %v465
  %v467 = vpop.f32.mrf.mxu0
  %v468 = vadd.f32 %v107, %v467
  %469 = vmatprep.mubr.bf16.mxu0 0
  %470 = vmatmul.mubr.bf16.gmra.mxu0 %v307
  %v471 = vpop.f32.mrf.mxu0
  %v472 = vadd.f32 %v103, %v471
  %v473 = vpop.f32.mrf.mxu0
  %v474 = vadd.f32 %v107, %v473
  %v475 = vpop.f32.mrf.mxu0
  %v476 = vadd.f32 %v103, %v475
  %v477 = vpop.f32.mrf.mxu0
  %v478 = vadd.f32 %v107, %v477
  %479 = vmatprep.mubr.bf16.mxu0 0
  %480 = vmatmul.mubr.bf16.gmra.mxu0 %v310
  %v481 = vpop.f32.mrf.mxu0
  %v482 = vadd.f32 %v103, %v481
  %v483 = vpop.f32.mrf.mxu0
  %v484 = vadd.f32 %v107, %v483
  %v485 = vpop.f32.mrf.mxu0
  %v486 = vadd.f32 %v103, %v485
  %v487 = vpop.f32.mrf.mxu0
  %v488 = vadd.f32 %v107, %v487
  %489 = vmatprep.mubr.bf16.mxu0 0
  %490 = vmatmul.mubr.bf16.gmra.mxu0 %v313
  %v491 = vpop.f32.mrf.mxu0
  %v492 = vadd.f32 %v103, %v491
  %v493 = vpop.f32.mrf.mxu0
  %v494 = vadd.f32 %v107, %v493
  %v495 = vpop.f32.mrf.mxu0
  %v496 = vadd.f32 %v103, %v495
  %v497 = vpop.f32.mrf.mxu0
  %v498 = vadd.f32 %v107, %v497
  %499 = vmatprep.mubr.bf16.mxu0 0
  %500 = vmatmul.mubr.bf16.gmra.mxu0 %v316
  %v501 = vpop.f32.mrf.mxu0
  %v502 = vadd.f32 %v103, %v501
  %v503 = vpop.f32.mrf.mxu0
  %v504 = vadd.f32 %v107, %v503
  %v505 = vpop.f32.mrf.mxu0
  %v506 = vadd.f32 %v103, %v505
  %v507 = vpop.f32.mrf.mxu0
  %v508 = vadd.f32 %v107, %v507
  %509 = vmatprep.mubr.bf16.mxu0 0
  %510 = vmatmul.mubr.bf16.gmra.mxu0 %v319
  %v511 = vpop.f32.mrf.mxu0
  %v512 = vadd.f32 %v103, %v511
  %v513 = vpop.f32.mrf.mxu0
  %v514 = vadd.f32 %v107, %v513
  %v515 = vpop.f32.mrf.mxu0
  %v516 = vadd.f32 %v103, %v515
  %v517 = vpop.f32.mrf.mxu0
  %v518 = vadd.f32 %v107, %v517
  %519 = vmatprep.mubr.bf16.mxu0 0
  %520 = vmatmul.mubr.bf16.gmra.mxu0 %v322
  %v521 = vpop.f32.mrf.mxu0
  %v522 = vadd.f32 %v103, %v521
  %v523 = vpop.f32.mrf.mxu0
  %v524 = vadd.f32 %v107, %v523
  %v525 = vpop.f32.mrf.mxu0
  %v526 = vadd.f32 %v103, %v525
  %v527 = vpop.f32.mrf.mxu0
  %v528 = vadd.f32 %v107, %v527
  %529 = vmatprep.mubr.bf16.mxu0 0
  %530 = vmatmul.mubr.bf16.gmra.mxu0 %v325
  %v531 = vpop.f32.mrf.mxu0
  %v532 = vadd.f32 %v103, %v531
  %v533 = vpop.f32.mrf.mxu0
  %v534 = vadd.f32 %v107, %v533
  %v535 = vpop.f32.mrf.mxu0
  %v536 = vadd.f32 %v103, %v535
  %v537 = vpop.f32.mrf.mxu0
  %v538 = vadd.f32 %v107, %v537
  %539 = vmatprep.mubr.bf16.mxu0 0
  %540 = vmatmul.mubr.bf16.gmra.mxu0 %v328
  %v541 = vpop.f32.mrf.mxu0
  %v542 = vadd.f32 %v103, %v541
  %v543 = vpop.f32.mrf.mxu0
  %v544 = vadd.f32 %v107, %v543
  %v545 = vpop.f32.mrf.mxu0
  %v546 = vadd.f32 %v103, %v545
  %v547 = vpop.f32.mrf.mxu0
  %v548 = vadd.f32 %v107, %v547
  %549 = vmatprep.mubr.bf16.mxu0 0
  %550 = vmatmul.mubr.bf16.gmra.mxu0 %v331
  %v551 = vpop.f32.mrf.mxu0
  %v552 = vadd.f32 %v103, %v551
  %v553 = vpop.f32.mrf.mxu0
  %v554 = vadd.f32 %v107, %v553
  %v555 = vpop.f32.mrf.mxu0
  %v556 = vadd.f32 %v103, %v555
  %v557 = vpop.f32.mrf.mxu0
  %v558 = vadd.f32 %v107, %v557
  %559 = vmatprep.mubr.bf16.mxu0 0
  %560 = vmatmul.mubr.bf16.gmra.mxu0 %v334
  %v561 = vpop.f32.mrf.mxu0
  %v562 = vadd.f32 %v103, %v561
  %v563 = vpop.f32.mrf.mxu0
  %v564 = vadd.f32 %v107, %v563
  %v565 = vpop.f32.mrf.mxu0
  %v566 = vadd.f32 %v103, %v565
  %v567 = vpop.f32.mrf.mxu0
  %v568 = vadd.f32 %v107, %v567
  %569 = vmatprep.mubr.bf16.mxu0 0
  %570 = vmatmul.mubr.bf16.gmra.mxu0 %v337
  %v571 = vpop.f32.mrf.mxu0
  %v572 = vadd.f32 %v103, %v571
  %v573 = vpop.f32.mrf.mxu0
  %v574 = vadd.f32 %v107, %v573
  %v575 = vpop.f32.mrf.mxu0
  %v576 = vadd.f32 %v103, %v575
  %v577 = vpop.f32.mrf.mxu0
  %v578 = vadd.f32 %v107, %v577
  %579 = vmatprep.mubr.bf16.mxu0 0
  %580 = vmatmul.mubr.bf16.gmra.mxu0 %v340
  %v581 = vpop.f32.mrf.mxu0
  %v582 = vadd.f32 %v103, %v581
  %v583 = vpop.f32.mrf.mxu0
  %v584 = vadd.f32 %v107, %v583
  %v585 = vpop.f32.mrf.mxu0
  %v586 = vadd.f32 %v103, %v585
  %v587 = vpop.f32.mrf.mxu0
  %v588 = vadd.f32 %v107, %v587
  %589 = vmatprep.mubr.bf16.mxu0 0
  %590 = vmatmul.mubr.bf16.gmra.mxu0 %v343
  %v591 = vpop.f32.mrf.mxu0
  %v592 = vadd.f32 %v103, %v591
  %v593 = vpop.f32.mrf.mxu0
  %v594 = vadd.f32 %v107, %v593
  %v595 = vpop.f32.mrf.mxu0
  %v596 = vadd.f32 %v103, %v595
  %v597 = vpop.f32.mrf.mxu0
  %v598 = vadd.f32 %v107, %v597
  %599 = vmatprep.mubr.bf16.mxu0 0
  %600 = vmatmul.mubr.bf16.gmra.mxu0 %v346
  %v601 = vpop.f32.mrf.mxu0
  %v602 = vadd.f32 %v103, %v601
  %v603 = vpop.f32.mrf.mxu0
  %v604 = vadd.f32 %v107, %v603
  %v605 = vpop.f32.mrf.mxu0
  %v606 = vadd.f32 %v103, %v605
  %v607 = vpop.f32.mrf.mxu0
  %v608 = vadd.f32 %v107, %v607
  %609 = vmatprep.mubr.bf16.mxu0 0
  %610 = vmatmul.mubr.bf16.gmra.mxu0 %v349
  %v611 = vpop.f32.mrf.mxu0
  %v612 = vadd.f32 %v103, %v611
  %v613 = vpop.f32.mrf.mxu0
  %v614 = vadd.f32 %v107, %v613
  %v615 = vpop.f32.mrf.mxu0
  %v616 = vadd.f32 %v103, %v615
  %v617 = vpop.f32.mrf.mxu0
  %v618 = vadd.f32 %v107, %v617
  %619 = vmatprep.mubr.bf16.mxu0 0
  %620 = vmatmul.mubr.bf16.gmra.mxu0 %v352
  %v621 = vpop.f32.mrf.mxu0
  %v622 = vadd.f32 %v103, %v621
  %v623 = vpop.f32.mrf.mxu0
  %v624 = vadd.f32 %v107, %v623
  %v625 = vpop.f32.mrf.mxu0
  %v626 = vadd.f32 %v103, %v625
  %v627 = vpop.f32.mrf.mxu0
  %v628 = vadd.f32 %v107, %v627
  %629 = vmatprep.mubr.bf16.mxu0 0
  %630 = vmatmul.mubr.bf16.gmra.mxu0 %v355
  %v631 = vpop.f32.mrf.mxu0
  %v632 = vadd.f32 %v103, %v631
  %v633 = vpop.f32.mrf.mxu0
  %v634 = vadd.f32 %v107, %v633
  %v635 = vpop.f32.mrf.mxu0
  %v636 = vadd.f32 %v103, %v635
  %v637 = vpop.f32.mrf.mxu0
  %v638 = vadd.f32 %v107, %v637
  %639 = vmatprep.mubr.bf16.mxu0 0
  %640 = vmatmul.mubr.bf16.gmra.mxu0 %v358
  %v641 = vpop.f32.mrf.mxu0
  %v642 = vadd.f32 %v103, %v641
  %v643 = vpop.f32.mrf.mxu0
  %v644 = vadd.f32 %v107, %v643
  %v645 = vpop.f32.mrf.mxu0
  %v646 = vadd.f32 %v103, %v645
  %v647 = vpop.f32.mrf.mxu0
  %v648 = vadd.f32 %v107, %v647
  %649 = vmatprep.mubr.bf16.mxu0 0
  %650 = vmatmul.mubr.bf16.gmra.mxu0 %v361
  %v651 = vpop.f32.mrf.mxu0
  %v652 = vadd.f32 %v103, %v651
  %v653 = vpop.f32.mrf.mxu0
  %v654 = vadd.f32 %v107, %v653
  %v655 = vpop.f32.mrf.mxu0
  %v656 = vadd.f32 %v103, %v655
  %v657 = vpop.f32.mrf.mxu0
  %v658 = vadd.f32 %v107, %v657
  %659 = vmatprep.mubr.bf16.mxu0 0
  %660 = vmatmul.mubr.bf16.gmra.mxu0 %v364
  %v661 = vpop.f32.mrf.mxu0
  %v662 = vadd.f32 %v103, %v661
  %v663 = vpop.f32.mrf.mxu0
  %v664 = vadd.f32 %v107, %v663
  %v665 = vpop.f32.mrf.mxu0
  %v666 = vadd.f32 %v103, %v665
  %v667 = vpop.f32.mrf.mxu0
  %v668 = vadd.f32 %v107, %v667
  %669 = vmatprep.mubr.bf16.mxu0 0
  %670 = vmatmul.mubr.bf16.gmra.mxu0 %v367
  %v671 = vpop.f32.mrf.mxu0
  %v672 = vadd.f32 %v103, %v671
  %v673 = vpop.f32.mrf.mxu0
  %v674 = vadd.f32 %v107, %v673
  %v675 = vpop.f32.mrf.mxu0
  %v676 = vadd.f32 %v103, %v675
  %v677 = vpop.f32.mrf.mxu0
  %v678 = vadd.f32 %v107, %v677
  %679 = vmatprep.mubr.bf16.mxu0 0
  %680 = vmatmul.mubr.bf16.gmra.mxu0 %v370
  %v681 = vpop.f32.mrf.mxu0
  %v682 = vadd.f32 %v103, %v681
  %v683 = vpop.f32.mrf.mxu0
  %v684 = vadd.f32 %v107, %v683
  %v685 = vpop.f32.mrf.mxu0
  %v686 = vadd.f32 %v103, %v685
  %v687 = vpop.f32.mrf.mxu0
  %v688 = vadd.f32 %v107, %v687
  %689 = vmatprep.mubr.bf16.mxu0 0
  %690 = vmatmul.mubr.bf16.gmra.mxu0 %v373
  %v691 = vpop.f32.mrf.mxu0
  %v692 = vadd.f32 %v103, %v691
  %v693 = vpop.f32.mrf.mxu0
  %v694 = vadd.f32 %v107, %v693
  %v695 = vpop.f32.mrf.mxu0
  %v696 = vadd.f32 %v103, %v695
  %v697 = vpop.f32.mrf.mxu0
  %v698 = vadd.f32 %v107, %v697
  %699 = vmatprep.mubr.bf16.mxu0 0
  %700 = vmatmul.mubr.bf16.gmra.mxu0 %v376
  %v701 = vpop.f32.mrf.mxu0
  %v702 = vadd.f32 %v103, %v701
  %v703 = vpop.f32.mrf.mxu0
  %v704 = vadd.f32 %v107, %v703
  %v705 = vpop.f32.mrf.mxu0
  %v706 = vadd.f32 %v103, %v705
  %v707 = vpop.f32.mrf.mxu0
  %v708 = vadd.f32 %v107, %v707
  %709 = vmatprep.mubr.bf16.mxu0 0
  %710 = vmatmul.mubr.bf16.gmra.mxu0 %v379
  %v711 = vpop.f32.mrf.mxu0
  %v712 = vadd.f32 %v103, %v711
  %v713 = vpop.f32.mrf.mxu0
  %v714 = vadd.f32 %v107, %v713
  %v715 = vpop.f32.mrf.mxu0
  %v716 = vadd.f32 %v103, %v715
  %v717 = vpop.f32.mrf.mxu0
  %v718 = vadd.f32 %v107, %v717
  %719 = vmatprep.mubr.bf16.mxu0 0
  %720 = vmatmul.mubr.bf16.gmra.mxu0 %v382
  %v721 = vpop.f32.mrf.mxu0
  %v722 = vadd.f32 %v103, %v721
  %v723 = vpop.f32.mrf.mxu0
  %v724 = vadd.f32 %v107, %v723
  %v725 = vpop.f32.mrf.mxu0
  %v726 = vadd.f32 %v103, %v725
  %v727 = vpop.f32.mrf.mxu0
  %v728 = vadd.f32 %v107, %v727
  %729 = vmatprep.mubr.bf16.mxu0 0
  %730 = vmatmul.mubr.bf16.gmra.mxu0 %v385
  %v731 = vpop.f32.mrf.mxu0
  %v732 = vadd.f32 %v103, %v731
  %v733 = vpop.f32.mrf.mxu0
  %v734 = vadd.f32 %v107, %v733
  %v735 = vpop.f32.mrf.mxu0
  %v736 = vadd.f32 %v103, %v735
  %v737 = vpop.f32.mrf.mxu0
  %v738 = vadd.f32 %v107, %v737
  %739 = vdwg.mxu0
  %v740 = vmax.f32 %v422, 0.0
  %v741 = vmax.f32 %v424, 0.0
  %v742 = vmax.f32 %v426, 0.0
  %v743 = vmax.f32 %v428, 0.0
  %v744 = vmax.f32 %v432, 0.0
  %v745 = vmax.f32 %v434, 0.0
  %v746 = vmax.f32 %v436, 0.0
  %v747 = vmax.f32 %v438, 0.0
  %v748 = vmax.f32 %v442, 0.0
  %v749 = vmax.f32 %v444, 0.0
  %v750 = vmax.f32 %v446, 0.0
  %v751 = vmax.f32 %v448, 0.0
  %v752 = vmax.f32 %v452, 0.0
  %v753 = vmax.f32 %v454, 0.0
  %v754 = vmax.f32 %v456, 0.0
  %v755 = vmax.f32 %v458, 0.0
  %v756 = vmax.f32 %v462, 0.0
  %v757 = vmax.f32 %v464, 0.0
  %v758 = vmax.f32 %v466, 0.0
  %v759 = vmax.f32 %v468, 0.0
  %v760 = vmax.f32 %v472, 0.0
  %v761 = vmax.f32 %v474, 0.0
  %v762 = vmax.f32 %v476, 0.0
  %v763 = vmax.f32 %v478, 0.0
  %v764 = vmax.f32 %v482, 0.0
  %v765 = vmax.f32 %v484, 0.0
  %v766 = vmax.f32 %v486, 0.0
  %v767 = vmax.f32 %v488, 0.0
  %v768 = vmax.f32 %v492, 0.0
  %v769 = vmax.f32 %v494, 0.0
  %v770 = vmax.f32 %v496, 0.0
  %v771 = vmax.f32 %v498, 0.0
  %v772 = vmax.f32 %v502, 0.0
  %v773 = vmax.f32 %v504, 0.0
  %v774 = vmax.f32 %v506, 0.0
  %v775 = vmax.f32 %v508, 0.0
  %v776 = vmax.f32 %v512, 0.0
  %v777 = vmax.f32 %v514, 0.0
  %v778 = vmax.f32 %v516, 0.0
  %v779 = vmax.f32 %v518, 0.0
  %v780 = vmax.f32 %v522, 0.0
  %v781 = vmax.f32 %v524, 0.0
  %v782 = vmax.f32 %v526, 0.0
  %v783 = vmax.f32 %v528, 0.0
  %v784 = vmax.f32 %v532, 0.0
  %v785 = vmax.f32 %v534, 0.0
  %v786 = vmax.f32 %v536, 0.0
  %v787 = vmax.f32 %v538, 0.0
  %v788 = vmax.f32 %v542, 0.0
  %v789 = vmax.f32 %v544, 0.0
  %v790 = vmax.f32 %v546, 0.0
  %v791 = vmax.f32 %v548, 0.0
  %v792 = vmax.f32 %v552, 0.0
  %v793 = vmax.f32 %v554, 0.0
  %v794 = vmax.f32 %v556, 0.0
  %v795 = vmax.f32 %v558, 0.0
  %v796 = vmax.f32 %v562, 0.0
  %v797 = vmax.f32 %v564, 0.0
  %v798 = vmax.f32 %v566, 0.0
  %v799 = vmax.f32 %v568, 0.0
  %v800 = vmax.f32 %v572, 0.0
  %v801 = vmax.f32 %v574, 0.0
  %v802 = vmax.f32 %v576, 0.0
  %v803 = vmax.f32 %v578, 0.0
  %v804 = vmax.f32 %v582, 0.0
  %v805 = vmax.f32 %v584, 0.0
  %v806 = vmax.f32 %v586, 0.0
  %v807 = vmax.f32 %v588, 0.0
  %v808 = vmax.f32 %v592, 0.0
  %v809 = vmax.f32 %v594, 0.0
  %v810 = vmax.f32 %v596, 0.0
  %v811 = vmax.f32 %v598, 0.0
  %v812 = vmax.f32 %v602, 0.0
  %v813 = vmax.f32 %v604, 0.0
  %v814 = vmax.f32 %v606, 0.0
  %v815 = vmax.f32 %v608, 0.0
  %v816 = vmax.f32 %v612, 0.0
  %v817 = vmax.f32 %v614, 0.0
  %v818 = vmax.f32 %v616, 0.0
  %v819 = vmax.f32 %v618, 0.0
  %v820 = vmax.f32 %v622, 0.0
  %v821 = vmax.f32 %v624, 0.0
  %v822 = vmax.f32 %v626, 0.0
  %v823 = vmax.f32 %v628, 0.0
  %v824 = vmax.f32 %v632, 0.0
  %v825 = vmax.f32 %v634, 0.0
  %v826 = vmax.f32 %v636, 0.0
  %v827 = vmax.f32 %v638, 0.0
  %v828 = vmax.f32 %v642, 0.0
  %v829 = vmax.f32 %v644, 0.0
  %v830 = vmax.f32 %v646, 0.0
  %v831 = vmax.f32 %v648, 0.0
  %v832 = vmax.f32 %v652, 0.0
  %v833 = vmax.f32 %v654, 0.0
  %v834 = vmax.f32 %v656, 0.0
  %v835 = vmax.f32 %v658, 0.0
  %v836 = vmax.f32 %v662, 0.0
  %v837 = vmax.f32 %v664, 0.0
  %v838 = vmax.f32 %v666, 0.0
  %v839 = vmax.f32 %v668, 0.0
  %v840 = vmax.f32 %v672, 0.0
  %v841 = vmax.f32 %v674, 0.0
  %v842 = vmax.f32 %v676, 0.0
  %v843 = vmax.f32 %v678, 0.0
  %v844 = vmax.f32 %v682, 0.0
  %v845 = vmax.f32 %v684, 0.0
  %v846 = vmax.f32 %v686, 0.0
  %v847 = vmax.f32 %v688, 0.0
  %v848 = vmax.f32 %v692, 0.0
  %v849 = vmax.f32 %v694, 0.0
  %v850 = vmax.f32 %v696, 0.0
  %v851 = vmax.f32 %v698, 0.0
  %v852 = vmax.f32 %v702, 0.0
  %v853 = vmax.f32 %v704, 0.0
  %v854 = vmax.f32 %v706, 0.0
  %v855 = vmax.f32 %v708, 0.0
  %v856 = vmax.f32 %v712, 0.0
  %v857 = vmax.f32 %v714, 0.0
  %v858 = vmax.f32 %v716, 0.0
  %v859 = vmax.f32 %v718, 0.0
  %v860 = vmax.f32 %v722, 0.0
  %v861 = vmax.f32 %v724, 0.0
  %v862 = vmax.f32 %v726, 0.0
  %v863 = vmax.f32 %v728, 0.0
  %v864 = vmax.f32 %v732, 0.0
  %v865 = vmax.f32 %v734, 0.0
  %v866 = vmax.f32 %v736, 0.0
  %v867 = vmax.f32 %v738, 0.0
  %v868 = vld [vmem:[%s1] sm:$0xff]
  %v869 = vld [vmem:[%s1 + $0x8] sm:$0xff]
  %v870 = vpack.c.bf16 %v742, %v740
  %v871 = vpack.c.bf16 %v743, %v741
  %v872 = vpack.c.bf16 %v746, %v744
  %v873 = vpack.c.bf16 %v747, %v745
  %v874 = vpack.c.bf16 %v750, %v748
  %v875 = vpack.c.bf16 %v751, %v749
  %v876 = vpack.c.bf16 %v754, %v752
  %v877 = vpack.c.bf16 %v755, %v753
  %v878 = vpack.c.bf16 %v758, %v756
  %v879 = vpack.c.bf16 %v759, %v757
  %v880 = vpack.c.bf16 %v762, %v760
  %v881 = vpack.c.bf16 %v763, %v761
  %v882 = vpack.c.bf16 %v766, %v764
  %v883 = vpack.c.bf16 %v767, %v765
  %v884 = vpack.c.bf16 %v770, %v768
  %v885 = vpack.c.bf16 %v771, %v769
  %v886 = vpack.c.bf16 %v774, %v772
  %v887 = vpack.c.bf16 %v775, %v773
  %v888 = vpack.c.bf16 %v778, %v776
  %v889 = vpack.c.bf16 %v779, %v777
  %v890 = vpack.c.bf16 %v782, %v780
  %v891 = vpack.c.bf16 %v783, %v781
  %v892 = vpack.c.bf16 %v786, %v784
  %v893 = vpack.c.bf16 %v787, %v785
  %v894 = vpack.c.bf16 %v790, %v788
  %v895 = vpack.c.bf16 %v791, %v789
  %v896 = vpack.c.bf16 %v794, %v792
  %v897 = vpack.c.bf16 %v795, %v793
  %v898 = vpack.c.bf16 %v798, %v796
  %v899 = vpack.c.bf16 %v799, %v797
  %v900 = vpack.c.bf16 %v802, %v800
  %v901 = vpack.c.bf16 %v803, %v801
  %v902 = vpack.c.bf16 %v806, %v804
  %v903 = vpack.c.bf16 %v807, %v805
  %v904 = vpack.c.bf16 %v810, %v808
  %v905 = vpack.c.bf16 %v811, %v809
  %v906 = vpack.c.bf16 %v814, %v812
  %v907 = vpack.c.bf16 %v815, %v813
  %v908 = vpack.c.bf16 %v818, %v816
  %v909 = vpack.c.bf16 %v819, %v817
  %v910 = vpack.c.bf16 %v822, %v820
  %v911 = vpack.c.bf16 %v823, %v821
  %v912 = vpack.c.bf16 %v826, %v824
  %v913 = vpack.c.bf16 %v827, %v825
  %v914 = vpack.c.bf16 %v830, %v828
  %v915 = vpack.c.bf16 %v831, %v829
  %v916 = vpack.c.bf16 %v834, %v832
  %v917 = vpack.c.bf16 %v835, %v833
  %v918 = vpack.c.bf16 %v838, %v836
  %v919 = vpack.c.bf16 %v839, %v837
  %v920 = vpack.c.bf16 %v842, %v840
  %v921 = vpack.c.bf16 %v843, %v841
  %v922 = vpack.c.bf16 %v846, %v844
  %v923 = vpack.c.bf16 %v847, %v845
  %v924 = vpack.c.bf16 %v850, %v848
  %v925 = vpack.c.bf16 %v851, %v849
  %v926 = vpack.c.bf16 %v854, %v852
  %v927 = vpack.c.bf16 %v855, %v853
  %v928 = vpack.c.bf16 %v858, %v856
  %v929 = vpack.c.bf16 %v859, %v857
  %v930 = vpack.c.bf16 %v862, %v860
  %v931 = vpack.c.bf16 %v863, %v861
  %v932 = vpack.c.bf16 %v866, %v864
  %v933 = vpack.c.bf16 %v867, %v865
  %v936 = vunpack.c.l.b16 %v868
  %v937 = vunpack.c.h.b16 %v868
  %v938 = vunpack.c.l.b16 %v869
  %v939 = vunpack.c.h.b16 %v869
  %v940 = vpack.c.b16 %v936, %v936
  %v941 = vpack.c.b16 %v937, %v937
  %v942 = vpack.c.b16 %v938, %v938
  %v943 = vpack.c.b16 %v939, %v939
  %948 = vmatprep.subr.bf16.mxu0 %v885
  %949 = vmatpush1.bf16.msra.mxu0 %v884
  %950 = vmatprep.subr.bf16.mxu0 %v883
  %951 = vmatpush1.bf16.msra.mxu0 %v882
  %952 = vmatprep.subr.bf16.mxu0 %v881
  %953 = vmatpush1.bf16.msra.mxu0 %v880
  %954 = vmatprep.subr.bf16.mxu0 %v879
  %955 = vmatpush1.bf16.msra.mxu0 %v878
  %956 = vmatprep.subr.bf16.mxu0 %v877
  %957 = vmatpush1.bf16.msra.mxu0 %v876
  %958 = vmatprep.subr.bf16.mxu0 %v875
  %959 = vmatpush1.bf16.msra.mxu0 %v874
  %960 = vmatprep.subr.bf16.mxu0 %v873
  %961 = vmatpush1.bf16.msra.mxu0 %v872
  %962 = vmatprep.subr.bf16.mxu0 %v871
  %963 = vmatpush1.bf16.msra.mxu0 %v870
  %964 = vmatprep.subr.bf16.mxu0 %v901
  %965 = vmatpush2.bf16.msra.mxu0 %v900
  %966 = vmatprep.subr.bf16.mxu0 %v899
  %967 = vmatpush2.bf16.msra.mxu0 %v898
  %968 = vmatprep.subr.bf16.mxu0 %v897
  %969 = vmatpush2.bf16.msra.mxu0 %v896
  %970 = vmatprep.subr.bf16.mxu0 %v895
  %971 = vmatpush2.bf16.msra.mxu0 %v894
  %972 = vmatprep.subr.bf16.mxu0 %v893
  %973 = vmatpush2.bf16.msra.mxu0 %v892
  %974 = vmatprep.subr.bf16.mxu0 %v891
  %975 = vmatpush2.bf16.msra.mxu0 %v890
  %976 = vmatprep.subr.bf16.mxu0 %v889
  %977 = vmatpush2.bf16.msra.mxu0 %v888
  %978 = vmatprep.subr.bf16.mxu0 %v887
  %979 = vmatpush2.bf16.msra.mxu0 %v886
  %980 = vmatprep.mubr.bf16.mxu0 %v941
  %981 = vmatmul.mubr.bf16.gmra.mxu0 %v940
  %v982 = vpop.f32.mrf.mxu0
  %v983 = vadd.f32 0.0, %v982
  %v984 = vpop.f32.mrf.mxu0
  %v985 = vadd.f32 0.0, %v984
  %v986 = vpop.f32.mrf.mxu0
  %v987 = vpop.f32.mrf.mxu0
  %988 = vdwg.mxu0
  %989 = vmatprep.subr.bf16.mxu0 %v917
  %990 = vmatpush1.bf16.msra.mxu0 %v916
  %991 = vmatprep.subr.bf16.mxu0 %v915
  %992 = vmatpush1.bf16.msra.mxu0 %v914
  %993 = vmatprep.subr.bf16.mxu0 %v913
  %994 = vmatpush1.bf16.msra.mxu0 %v912
  %995 = vmatprep.subr.bf16.mxu0 %v911
  %996 = vmatpush1.bf16.msra.mxu0 %v910
  %997 = vmatprep.subr.bf16.mxu0 %v909
  %998 = vmatpush1.bf16.msra.mxu0 %v908
  %999 = vmatprep.subr.bf16.mxu0 %v907
  %1000 = vmatpush1.bf16.msra.mxu0 %v906
  %1001 = vmatprep.subr.bf16.mxu0 %v905
  %1002 = vmatpush1.bf16.msra.mxu0 %v904
  %1003 = vmatprep.subr.bf16.mxu0 %v903
  %1004 = vmatpush1.bf16.msra.mxu0 %v902
  %1005 = vmatprep.subr.bf16.mxu0 %v933
  %1006 = vmatpush2.bf16.msra.mxu0 %v932
  %1007 = vmatprep.subr.bf16.mxu0 %v931
  %1008 = vmatpush2.bf16.msra.mxu0 %v930
  %1009 = vmatprep.subr.bf16.mxu0 %v929
  %1010 = vmatpush2.bf16.msra.mxu0 %v928
  %1011 = vmatprep.subr.bf16.mxu0 %v927
  %1012 = vmatpush2.bf16.msra.mxu0 %v926
  %1013 = vmatprep.subr.bf16.mxu0 %v925
  %1014 = vmatpush2.bf16.msra.mxu0 %v924
  %1015 = vmatprep.subr.bf16.mxu0 %v923
  %1016 = vmatpush2.bf16.msra.mxu0 %v922
  %1017 = vmatprep.subr.bf16.mxu0 %v921
  %1018 = vmatpush2.bf16.msra.mxu0 %v920
  %1019 = vmatprep.subr.bf16.mxu0 %v919
  %1020 = vmatpush2.bf16.msra.mxu0 %v918
  %1021 = vmatprep.mubr.bf16.mxu0 %v943
  %1022 = vmatmul.mubr.bf16.gmra.mxu0 %v942
  %v1023 = vpop.f32.mrf.mxu0
  %v1024 = vadd.f32 %v983, %v1023
  %v1025 = vpop.f32.mrf.mxu0
  %v1026 = vadd.f32 %v985, %v1025
  %v1027 = vpop.f32.mrf.mxu0
  %v1028 = vpop.f32.mrf.mxu0
  %1029 = vdwg.mxu0
  %v1030 = vpack.c.bf16 %v1024, %v1024
  %v1031 = vpack.c.bf16 %v1026, %v1026
  %v1032 = vld [vmem:[%s4] sm:$0xff]
  %v1033 = vld [vmem:[%s4 + $0x8] sm:$0xff]
  %v1034 = vld [vmem:[%s4 + $0x10] sm:$0xff]
  %v1035 = vld [vmem:[%s4 + $0x18] sm:$0xff]
  %v1036 = vld [vmem:[%s4 + $0x20] sm:$0xff]
  %v1037 = vld [vmem:[%s4 + $0x28] sm:$0xff]
  %v1038 = vld [vmem:[%s4 + $0x30] sm:$0xff]
  %v1039 = vld [vmem:[%s4 + $0x38] sm:$0xff]
  %v1040 = vld [vmem:[%s4 + $0x40] sm:$0xff]
  %v1041 = vld [vmem:[%s4 + $0x48] sm:$0xff]
  %v1042 = vld [vmem:[%s4 + $0x50] sm:$0xff]
  %v1043 = vld [vmem:[%s4 + $0x58] sm:$0xff]
  %v1044 = vld [vmem:[%s4 + $0x60] sm:$0xff]
  %v1045 = vld [vmem:[%s4 + $0x68] sm:$0xff]
  %v1046 = vld [vmem:[%s4 + $0x70] sm:$0xff]
  %v1047 = vld [vmem:[%s4 + $0x78] sm:$0xff]
  %v1048 = vld [vmem:[%s4 + $0x80] sm:$0xff]
  %v1049 = vld [vmem:[%s4 + $0x88] sm:$0xff]
  %v1050 = vld [vmem:[%s4 + $0x90] sm:$0xff]
  %v1051 = vld [vmem:[%s4 + $0x98] sm:$0xff]
  %v1052 = vld [vmem:[%s4 + $0xa0] sm:$0xff]
  %v1053 = vld [vmem:[%s4 + $0xa8] sm:$0xff]
  %v1054 = vld [vmem:[%s4 + $0xb0] sm:$0xff]
  %v1055 = vld [vmem:[%s4 + $0xb8] sm:$0xff]
  %v1056 = vld [vmem:[%s4 + $0xc0] sm:$0xff]
  %v1057 = vld [vmem:[%s4 + $0xc8] sm:$0xff]
  %v1058 = vld [vmem:[%s4 + $0xd0] sm:$0xff]
  %v1059 = vld [vmem:[%s4 + $0xd8] sm:$0xff]
  %v1060 = vld [vmem:[%s4 + $0xe0] sm:$0xff]
  %v1061 = vld [vmem:[%s4 + $0xe8] sm:$0xff]
  %v1062 = vld [vmem:[%s4 + $0xf0] sm:$0xff]
  %v1063 = vld [vmem:[%s4 + $0xf8] sm:$0xff]
  %v1064 = vld [vmem:[%s4 + $0x100] sm:$0xff]
  %v1065 = vld [vmem:[%s4 + $0x108] sm:$0xff]
  %v1066 = vld [vmem:[%s4 + $0x110] sm:$0xff]
  %v1067 = vld [vmem:[%s4 + $0x118] sm:$0xff]
  %v1068 = vld [vmem:[%s4 + $0x120] sm:$0xff]
  %v1069 = vld [vmem:[%s4 + $0x128] sm:$0xff]
  %v1070 = vld [vmem:[%s4 + $0x130] sm:$0xff]
  %v1071 = vld [vmem:[%s4 + $0x138] sm:$0xff]
  %v1072 = vld [vmem:[%s4 + $0x140] sm:$0xff]
  %v1073 = vld [vmem:[%s4 + $0x148] sm:$0xff]
  %v1074 = vld [vmem:[%s4 + $0x150] sm:$0xff]
  %v1075 = vld [vmem:[%s4 + $0x158] sm:$0xff]
  %v1076 = vld [vmem:[%s4 + $0x160] sm:$0xff]
  %v1077 = vld [vmem:[%s4 + $0x168] sm:$0xff]
  %v1078 = vld [vmem:[%s4 + $0x170] sm:$0xff]
  %v1079 = vld [vmem:[%s4 + $0x178] sm:$0xff]
  %v1080 = vld [vmem:[%s4 + $0x180] sm:$0xff]
  %v1081 = vld [vmem:[%s4 + $0x188] sm:$0xff]
  %v1082 = vld [vmem:[%s4 + $0x190] sm:$0xff]
  %v1083 = vld [vmem:[%s4 + $0x198] sm:$0xff]
  %v1084 = vld [vmem:[%s4 + $0x1a0] sm:$0xff]
  %v1085 = vld [vmem:[%s4 + $0x1a8] sm:$0xff]
  %v1086 = vld [vmem:[%s4 + $0x1b0] sm:$0xff]
  %v1087 = vld [vmem:[%s4 + $0x1b8] sm:$0xff]
  %v1088 = vld [vmem:[%s4 + $0x1c0] sm:$0xff]
  %v1089 = vld [vmem:[%s4 + $0x1c8] sm:$0xff]
  %v1090 = vld [vmem:[%s4 + $0x1d0] sm:$0xff]
  %v1091 = vld [vmem:[%s4 + $0x1d8] sm:$0xff]
  %v1092 = vld [vmem:[%s4 + $0x1e0] sm:$0xff]
  %v1093 = vld [vmem:[%s4 + $0x1e8] sm:$0xff]
  %v1094 = vld [vmem:[%s4 + $0x1f0] sm:$0xff]
  %v1095 = vld [vmem:[%s4 + $0x1f8] sm:$0xff]
  %v1096 = vld [vmem:[%s4 + $0x200] sm:$0xff]
  %v1097 = vld [vmem:[%s4 + $0x208] sm:$0xff]
  %v1098 = vld [vmem:[%s4 + $0x210] sm:$0xff]
  %v1099 = vld [vmem:[%s4 + $0x218] sm:$0xff]
  %v1100 = vld [vmem:[%s4 + $0x220] sm:$0xff]
  %v1101 = vld [vmem:[%s4 + $0x228] sm:$0xff]
  %v1102 = vld [vmem:[%s4 + $0x230] sm:$0xff]
  %v1103 = vld [vmem:[%s4 + $0x238] sm:$0xff]
  %v1104 = vld [vmem:[%s4 + $0x240] sm:$0xff]
  %v1105 = vld [vmem:[%s4 + $0x248] sm:$0xff]
  %v1106 = vld [vmem:[%s4 + $0x250] sm:$0xff]
  %v1107 = vld [vmem:[%s4 + $0x258] sm:$0xff]
  %v1108 = vld [vmem:[%s4 + $0x260] sm:$0xff]
  %v1109 = vld [vmem:[%s4 + $0x268] sm:$0xff]
  %v1110 = vld [vmem:[%s4 + $0x270] sm:$0xff]
  %v1111 = vld [vmem:[%s4 + $0x278] sm:$0xff]
  %v1112 = vld [vmem:[%s4 + $0x280] sm:$0xff]
  %v1113 = vld [vmem:[%s4 + $0x288] sm:$0xff]
  %v1114 = vld [vmem:[%s4 + $0x290] sm:$0xff]
  %v1115 = vld [vmem:[%s4 + $0x298] sm:$0xff]
  %v1116 = vld [vmem:[%s4 + $0x2a0] sm:$0xff]
  %v1117 = vld [vmem:[%s4 + $0x2a8] sm:$0xff]
  %v1118 = vld [vmem:[%s4 + $0x2b0] sm:$0xff]
  %v1119 = vld [vmem:[%s4 + $0x2b8] sm:$0xff]
  %v1120 = vld [vmem:[%s4 + $0x2c0] sm:$0xff]
  %v1121 = vld [vmem:[%s4 + $0x2c8] sm:$0xff]
  %v1122 = vld [vmem:[%s4 + $0x2d0] sm:$0xff]
  %v1123 = vld [vmem:[%s4 + $0x2d8] sm:$0xff]
  %v1124 = vld [vmem:[%s4 + $0x2e0] sm:$0xff]
  %v1125 = vld [vmem:[%s4 + $0x2e8] sm:$0xff]
  %v1126 = vld [vmem:[%s4 + $0x2f0] sm:$0xff]
  %v1127 = vld [vmem:[%s4 + $0x2f8] sm:$0xff]
  %v1128 = vld [vmem:[%s4 + $0x300] sm:$0xff]
  %v1129 = vld [vmem:[%s4 + $0x308] sm:$0xff]
  %v1130 = vld [vmem:[%s4 + $0x310] sm:$0xff]
  %v1131 = vld [vmem:[%s4 + $0x318] sm:$0xff]
  %v1132 = vld [vmem:[%s4 + $0x320] sm:$0xff]
  %v1133 = vld [vmem:[%s4 + $0x328] sm:$0xff]
  %v1134 = vld [vmem:[%s4 + $0x330] sm:$0xff]
  %v1135 = vld [vmem:[%s4 + $0x338] sm:$0xff]
  %v1136 = vld [vmem:[%s4 + $0x340] sm:$0xff]
  %v1137 = vld [vmem:[%s4 + $0x348] sm:$0xff]
  %v1138 = vld [vmem:[%s4 + $0x350] sm:$0xff]
  %v1139 = vld [vmem:[%s4 + $0x358] sm:$0xff]
  %v1140 = vld [vmem:[%s4 + $0x360] sm:$0xff]
  %v1141 = vld [vmem:[%s4 + $0x368] sm:$0xff]
  %v1142 = vld [vmem:[%s4 + $0x370] sm:$0xff]
  %v1143 = vld [vmem:[%s4 + $0x378] sm:$0xff]
  %v1144 = vld [vmem:[%s4 + $0x380] sm:$0xff]
  %v1145 = vld [vmem:[%s4 + $0x388] sm:$0xff]
  %v1146 = vld [vmem:[%s4 + $0x390] sm:$0xff]
  %v1147 = vld [vmem:[%s4 + $0x398] sm:$0xff]
  %v1148 = vld [vmem:[%s4 + $0x3a0] sm:$0xff]
  %v1149 = vld [vmem:[%s4 + $0x3a8] sm:$0xff]
  %v1150 = vld [vmem:[%s4 + $0x3b0] sm:$0xff]
  %v1151 = vld [vmem:[%s4 + $0x3b8] sm:$0xff]
  %v1152 = vld [vmem:[%s4 + $0x3c0] sm:$0xff]
  %v1153 = vld [vmem:[%s4 + $0x3c8] sm:$0xff]
  %v1154 = vld [vmem:[%s4 + $0x3d0] sm:$0xff]
  %v1155 = vld [vmem:[%s4 + $0x3d8] sm:$0xff]
  %v1156 = vld [vmem:[%s4 + $0x3e0] sm:$0xff]
  %v1157 = vld [vmem:[%s4 + $0x3e8] sm:$0xff]
  %v1158 = vld [vmem:[%s4 + $0x3f0] sm:$0xff]
  %v1159 = vld [vmem:[%s4 + $0x3f8] sm:$0xff]
  %v1160 = vld [vmem:[%s5] sm:$0xff]
  %v1162 = vlaneseq
  %v1163 = vshrl.u32 %v1162, 7
  %v1164 = vsub.s32 0, %v1163
  %v1165 = vrot.slane %v1160, %v1164
  %v1166 = vlaneseq
  %v1167 = vshrl.u32 %v1166, 7
  %v1168 = vsub.s32 1, %v1167
  %v1169 = vrot.slane %v1160, %v1168
  %v1170 = vlaneseq
  %v1171 = vshrl.u32 %v1170, 7
  %v1172 = vsub.s32 2, %v1171
  %v1173 = vrot.slane %v1160, %v1172
  %v1174 = vlaneseq
  %v1175 = vshrl.u32 %v1174, 7
  %v1176 = vsub.s32 3, %v1175
  %v1177 = vrot.slane %v1160, %v1176
  %v1178 = vlaneseq
  %v1179 = vshrl.u32 %v1178, 7
  %v1180 = vsub.s32 4, %v1179
  %v1181 = vrot.slane %v1160, %v1180
  %v1182 = vlaneseq
  %v1183 = vshrl.u32 %v1182, 7
  %v1184 = vsub.s32 5, %v1183
  %v1185 = vrot.slane %v1160, %v1184
  %v1186 = vlaneseq
  %v1187 = vshrl.u32 %v1186, 7
  %v1188 = vsub.s32 6, %v1187
  %v1189 = vrot.slane %v1160, %v1188
  %v1190 = vlaneseq
  %v1191 = vshrl.u32 %v1190, 7
  %v1192 = vsub.s32 7, %v1191
  %v1193 = vrot.slane %v1160, %v1192
  %v1330 = vunpack.c.l.b16 %v1032
  %v1331 = vunpack.c.h.b16 %v1032
  %v1332 = vunpack.c.l.b16 %v1033
  %v1333 = vunpack.c.h.b16 %v1033
  %v1334 = vunpack.c.l.b16 %v1034
  %v1335 = vunpack.c.h.b16 %v1034
  %v1336 = vunpack.c.l.b16 %v1035
  %v1337 = vunpack.c.h.b16 %v1035
  %v1338 = vunpack.c.l.b16 %v1036
  %v1339 = vunpack.c.h.b16 %v1036
  %v1340 = vunpack.c.l.b16 %v1037
  %v1341 = vunpack.c.h.b16 %v1037
  %v1342 = vunpack.c.l.b16 %v1038
  %v1343 = vunpack.c.h.b16 %v1038
  %v1344 = vunpack.c.l.b16 %v1039
  %v1345 = vunpack.c.h.b16 %v1039
  %v1346 = vunpack.c.l.b16 %v1040
  %v1347 = vunpack.c.h.b16 %v1040
  %v1348 = vunpack.c.l.b16 %v1041
  %v1349 = vunpack.c.h.b16 %v1041
  %v1350 = vunpack.c.l.b16 %v1042
  %v1351 = vunpack.c.h.b16 %v1042
  %v1352 = vunpack.c.l.b16 %v1043
  %v1353 = vunpack.c.h.b16 %v1043
  %v1354 = vunpack.c.l.b16 %v1044
  %v1355 = vunpack.c.h.b16 %v1044
  %v1356 = vunpack.c.l.b16 %v1045
  %v1357 = vunpack.c.h.b16 %v1045
  %v1358 = vunpack.c.l.b16 %v1046
  %v1359 = vunpack.c.h.b16 %v1046
  %v1360 = vunpack.c.l.b16 %v1047
  %v1361 = vunpack.c.h.b16 %v1047
  %v1362 = vunpack.c.l.b16 %v1048
  %v1363 = vunpack.c.h.b16 %v1048
  %v1364 = vunpack.c.l.b16 %v1049
  %v1365 = vunpack.c.h.b16 %v1049
  %v1366 = vunpack.c.l.b16 %v1050
  %v1367 = vunpack.c.h.b16 %v1050
  %v1368 = vunpack.c.l.b16 %v1051
  %v1369 = vunpack.c.h.b16 %v1051
  %v1370 = vunpack.c.l.b16 %v1052
  %v1371 = vunpack.c.h.b16 %v1052
  %v1372 = vunpack.c.l.b16 %v1053
  %v1373 = vunpack.c.h.b16 %v1053
  %v1374 = vunpack.c.l.b16 %v1054
  %v1375 = vunpack.c.h.b16 %v1054
  %v1376 = vunpack.c.l.b16 %v1055
  %v1377 = vunpack.c.h.b16 %v1055
  %v1378 = vunpack.c.l.b16 %v1056
  %v1379 = vunpack.c.h.b16 %v1056
  %v1380 = vunpack.c.l.b16 %v1057
  %v1381 = vunpack.c.h.b16 %v1057
  %v1382 = vunpack.c.l.b16 %v1058
  %v1383 = vunpack.c.h.b16 %v1058
  %v1384 = vunpack.c.l.b16 %v1059
  %v1385 = vunpack.c.h.b16 %v1059
  %v1386 = vunpack.c.l.b16 %v1060
  %v1387 = vunpack.c.h.b16 %v1060
  %v1388 = vunpack.c.l.b16 %v1061
  %v1389 = vunpack.c.h.b16 %v1061
  %v1390 = vunpack.c.l.b16 %v1062
  %v1391 = vunpack.c.h.b16 %v1062
  %v1392 = vunpack.c.l.b16 %v1063
  %v1393 = vunpack.c.h.b16 %v1063
  %v1394 = vunpack.c.l.b16 %v1064
  %v1395 = vunpack.c.h.b16 %v1064
  %v1396 = vunpack.c.l.b16 %v1065
  %v1397 = vunpack.c.h.b16 %v1065
  %v1398 = vunpack.c.l.b16 %v1066
  %v1399 = vunpack.c.h.b16 %v1066
  %v1400 = vunpack.c.l.b16 %v1067
  %v1401 = vunpack.c.h.b16 %v1067
  %v1402 = vunpack.c.l.b16 %v1068
  %v1403 = vunpack.c.h.b16 %v1068
  %v1404 = vunpack.c.l.b16 %v1069
  %v1405 = vunpack.c.h.b16 %v1069
  %v1406 = vunpack.c.l.b16 %v1070
  %v1407 = vunpack.c.h.b16 %v1070
  %v1408 = vunpack.c.l.b16 %v1071
  %v1409 = vunpack.c.h.b16 %v1071
  %v1410 = vunpack.c.l.b16 %v1072
  %v1411 = vunpack.c.h.b16 %v1072
  %v1412 = vunpack.c.l.b16 %v1073
  %v1413 = vunpack.c.h.b16 %v1073
  %v1414 = vunpack.c.l.b16 %v1074
  %v1415 = vunpack.c.h.b16 %v1074
  %v1416 = vunpack.c.l.b16 %v1075
  %v1417 = vunpack.c.h.b16 %v1075
  %v1418 = vunpack.c.l.b16 %v1076
  %v1419 = vunpack.c.h.b16 %v1076
  %v1420 = vunpack.c.l.b16 %v1077
  %v1421 = vunpack.c.h.b16 %v1077
  %v1422 = vunpack.c.l.b16 %v1078
  %v1423 = vunpack.c.h.b16 %v1078
  %v1424 = vunpack.c.l.b16 %v1079
  %v1425 = vunpack.c.h.b16 %v1079
  %v1426 = vunpack.c.l.b16 %v1080
  %v1427 = vunpack.c.h.b16 %v1080
  %v1428 = vunpack.c.l.b16 %v1081
  %v1429 = vunpack.c.h.b16 %v1081
  %v1430 = vunpack.c.l.b16 %v1082
  %v1431 = vunpack.c.h.b16 %v1082
  %v1432 = vunpack.c.l.b16 %v1083
  %v1433 = vunpack.c.h.b16 %v1083
  %v1434 = vunpack.c.l.b16 %v1084
  %v1435 = vunpack.c.h.b16 %v1084
  %v1436 = vunpack.c.l.b16 %v1085
  %v1437 = vunpack.c.h.b16 %v1085
  %v1438 = vunpack.c.l.b16 %v1086
  %v1439 = vunpack.c.h.b16 %v1086
  %v1440 = vunpack.c.l.b16 %v1087
  %v1441 = vunpack.c.h.b16 %v1087
  %v1442 = vunpack.c.l.b16 %v1088
  %v1443 = vunpack.c.h.b16 %v1088
  %v1444 = vunpack.c.l.b16 %v1089
  %v1445 = vunpack.c.h.b16 %v1089
  %v1446 = vunpack.c.l.b16 %v1090
  %v1447 = vunpack.c.h.b16 %v1090
  %v1448 = vunpack.c.l.b16 %v1091
  %v1449 = vunpack.c.h.b16 %v1091
  %v1450 = vunpack.c.l.b16 %v1092
  %v1451 = vunpack.c.h.b16 %v1092
  %v1452 = vunpack.c.l.b16 %v1093
  %v1453 = vunpack.c.h.b16 %v1093
  %v1454 = vunpack.c.l.b16 %v1094
  %v1455 = vunpack.c.h.b16 %v1094
  %v1456 = vunpack.c.l.b16 %v1095
  %v1457 = vunpack.c.h.b16 %v1095
  %v1458 = vunpack.c.l.b16 %v1096
  %v1459 = vunpack.c.h.b16 %v1096
  %v1460 = vunpack.c.l.b16 %v1097
  %v1461 = vunpack.c.h.b16 %v1097
  %v1462 = vunpack.c.l.b16 %v1098
  %v1463 = vunpack.c.h.b16 %v1098
  %v1464 = vunpack.c.l.b16 %v1099
  %v1465 = vunpack.c.h.b16 %v1099
  %v1466 = vunpack.c.l.b16 %v1100
  %v1467 = vunpack.c.h.b16 %v1100
  %v1468 = vunpack.c.l.b16 %v1101
  %v1469 = vunpack.c.h.b16 %v1101
  %v1470 = vunpack.c.l.b16 %v1102
  %v1471 = vunpack.c.h.b16 %v1102
  %v1472 = vunpack.c.l.b16 %v1103
  %v1473 = vunpack.c.h.b16 %v1103
  %v1474 = vunpack.c.l.b16 %v1104
  %v1475 = vunpack.c.h.b16 %v1104
  %v1476 = vunpack.c.l.b16 %v1105
  %v1477 = vunpack.c.h.b16 %v1105
  %v1478 = vunpack.c.l.b16 %v1106
  %v1479 = vunpack.c.h.b16 %v1106
  %v1480 = vunpack.c.l.b16 %v1107
  %v1481 = vunpack.c.h.b16 %v1107
  %v1482 = vunpack.c.l.b16 %v1108
  %v1483 = vunpack.c.h.b16 %v1108
  %v1484 = vunpack.c.l.b16 %v1109
  %v1485 = vunpack.c.h.b16 %v1109
  %v1486 = vunpack.c.l.b16 %v1110
  %v1487 = vunpack.c.h.b16 %v1110
  %v1488 = vunpack.c.l.b16 %v1111
  %v1489 = vunpack.c.h.b16 %v1111
  %v1490 = vunpack.c.l.b16 %v1112
  %v1491 = vunpack.c.h.b16 %v1112
  %v1492 = vunpack.c.l.b16 %v1113
  %v1493 = vunpack.c.h.b16 %v1113
  %v1494 = vunpack.c.l.b16 %v1114
  %v1495 = vunpack.c.h.b16 %v1114
  %v1496 = vunpack.c.l.b16 %v1115
  %v1497 = vunpack.c.h.b16 %v1115
  %v1498 = vunpack.c.l.b16 %v1116
  %v1499 = vunpack.c.h.b16 %v1116
  %v1500 = vunpack.c.l.b16 %v1117
  %v1501 = vunpack.c.h.b16 %v1117
  %v1502 = vunpack.c.l.b16 %v1118
  %v1503 = vunpack.c.h.b16 %v1118
  %v1504 = vunpack.c.l.b16 %v1119
  %v1505 = vunpack.c.h.b16 %v1119
  %v1506 = vunpack.c.l.b16 %v1120
  %v1507 = vunpack.c.h.b16 %v1120
  %v1508 = vunpack.c.l.b16 %v1121
  %v1509 = vunpack.c.h.b16 %v1121
  %v1510 = vunpack.c.l.b16 %v1122
  %v1511 = vunpack.c.h.b16 %v1122
  %v1512 = vunpack.c.l.b16 %v1123
  %v1513 = vunpack.c.h.b16 %v1123
  %v1514 = vunpack.c.l.b16 %v1124
  %v1515 = vunpack.c.h.b16 %v1124
  %v1516 = vunpack.c.l.b16 %v1125
  %v1517 = vunpack.c.h.b16 %v1125
  %v1518 = vunpack.c.l.b16 %v1126
  %v1519 = vunpack.c.h.b16 %v1126
  %v1520 = vunpack.c.l.b16 %v1127
  %v1521 = vunpack.c.h.b16 %v1127
  %v1522 = vunpack.c.l.b16 %v1128
  %v1523 = vunpack.c.h.b16 %v1128
  %v1524 = vunpack.c.l.b16 %v1129
  %v1525 = vunpack.c.h.b16 %v1129
  %v1526 = vunpack.c.l.b16 %v1130
  %v1527 = vunpack.c.h.b16 %v1130
  %v1528 = vunpack.c.l.b16 %v1131
  %v1529 = vunpack.c.h.b16 %v1131
  %v1530 = vunpack.c.l.b16 %v1132
  %v1531 = vunpack.c.h.b16 %v1132
  %v1532 = vunpack.c.l.b16 %v1133
  %v1533 = vunpack.c.h.b16 %v1133
  %v1534 = vunpack.c.l.b16 %v1134
  %v1535 = vunpack.c.h.b16 %v1134
  %v1536 = vunpack.c.l.b16 %v1135
  %v1537 = vunpack.c.h.b16 %v1135
  %v1538 = vunpack.c.l.b16 %v1136
  %v1539 = vunpack.c.h.b16 %v1136
  %v1540 = vunpack.c.l.b16 %v1137
  %v1541 = vunpack.c.h.b16 %v1137
  %v1542 = vunpack.c.l.b16 %v1138
  %v1543 = vunpack.c.h.b16 %v1138
  %v1544 = vunpack.c.l.b16 %v1139
  %v1545 = vunpack.c.h.b16 %v1139
  %v1546 = vunpack.c.l.b16 %v1140
  %v1547 = vunpack.c.h.b16 %v1140
  %v1548 = vunpack.c.l.b16 %v1141
  %v1549 = vunpack.c.h.b16 %v1141
  %v1550 = vunpack.c.l.b16 %v1142
  %v1551 = vunpack.c.h.b16 %v1142
  %v1552 = vunpack.c.l.b16 %v1143
  %v1553 = vunpack.c.h.b16 %v1143
  %v1554 = vunpack.c.l.b16 %v1144
  %v1555 = vunpack.c.h.b16 %v1144
  %v1556 = vunpack.c.l.b16 %v1145
  %v1557 = vunpack.c.h.b16 %v1145
  %v1558 = vunpack.c.l.b16 %v1146
  %v1559 = vunpack.c.h.b16 %v1146
  %v1560 = vunpack.c.l.b16 %v1147
  %v1561 = vunpack.c.h.b16 %v1147
  %v1562 = vunpack.c.l.b16 %v1148
  %v1563 = vunpack.c.h.b16 %v1148
  %v1564 = vunpack.c.l.b16 %v1149
  %v1565 = vunpack.c.h.b16 %v1149
  %v1566 = vunpack.c.l.b16 %v1150
  %v1567 = vunpack.c.h.b16 %v1150
  %v1568 = vunpack.c.l.b16 %v1151
  %v1569 = vunpack.c.h.b16 %v1151
  %v1570 = vunpack.c.l.b16 %v1152
  %v1571 = vunpack.c.h.b16 %v1152
  %v1572 = vunpack.c.l.b16 %v1153
  %v1573 = vunpack.c.h.b16 %v1153
  %v1574 = vunpack.c.l.b16 %v1154
  %v1575 = vunpack.c.h.b16 %v1154
  %v1576 = vunpack.c.l.b16 %v1155
  %v1577 = vunpack.c.h.b16 %v1155
  %v1578 = vunpack.c.l.b16 %v1156
  %v1579 = vunpack.c.h.b16 %v1156
  %v1580 = vunpack.c.l.b16 %v1157
  %v1581 = vunpack.c.h.b16 %v1157
  %v1582 = vunpack.c.l.b16 %v1158
  %v1583 = vunpack.c.h.b16 %v1158
  %v1584 = vunpack.c.l.b16 %v1159
  %v1585 = vunpack.c.h.b16 %v1159
  %v1586 = vpack.c.b16 %v1338, %v1330
  %v1587 = vpack.c.b16 %v1339, %v1331
  %v1588 = vpack.c.b16 %v1340, %v1332
  %v1589 = vpack.c.b16 %v1341, %v1333
  %v1590 = vpack.c.b16 %v1342, %v1334
  %v1591 = vpack.c.b16 %v1343, %v1335
  %v1592 = vpack.c.b16 %v1344, %v1336
  %v1593 = vpack.c.b16 %v1345, %v1337
  %v1594 = vpack.c.b16 %v1354, %v1346
  %v1595 = vpack.c.b16 %v1355, %v1347
  %v1596 = vpack.c.b16 %v1356, %v1348
  %v1597 = vpack.c.b16 %v1357, %v1349
  %v1598 = vpack.c.b16 %v1358, %v1350
  %v1599 = vpack.c.b16 %v1359, %v1351
  %v1600 = vpack.c.b16 %v1360, %v1352
  %v1601 = vpack.c.b16 %v1361, %v1353
  %v1602 = vpack.c.b16 %v1370, %v1362
  %v1603 = vpack.c.b16 %v1371, %v1363
  %v1604 = vpack.c.b16 %v1372, %v1364
  %v1605 = vpack.c.b16 %v1373, %v1365
  %v1606 = vpack.c.b16 %v1374, %v1366
  %v1607 = vpack.c.b16 %v1375, %v1367
  %v1608 = vpack.c.b16 %v1376, %v1368
  %v1609 = vpack.c.b16 %v1377, %v1369
  %v1610 = vpack.c.b16 %v1386, %v1378
  %v1611 = vpack.c.b16 %v1387, %v1379
  %v1612 = vpack.c.b16 %v1388, %v1380
  %v1613 = vpack.c.b16 %v1389, %v1381
  %v1614 = vpack.c.b16 %v1390, %v1382
  %v1615 = vpack.c.b16 %v1391, %v1383
  %v1616 = vpack.c.b16 %v1392, %v1384
  %v1617 = vpack.c.b16 %v1393, %v1385
  %v1618 = vpack.c.b16 %v1402, %v1394
  %v1619 = vpack.c.b16 %v1403, %v1395
  %v1620 = vpack.c.b16 %v1404, %v1396
  %v1621 = vpack.c.b16 %v1405, %v1397
  %v1622 = vpack.c.b16 %v1406, %v1398
  %v1623 = vpack.c.b16 %v1407, %v1399
  %v1624 = vpack.c.b16 %v1408, %v1400
  %v1625 = vpack.c.b16 %v1409, %v1401
  %v1626 = vpack.c.b16 %v1418, %v1410
  %v1627 = vpack.c.b16 %v1419, %v1411
  %v1628 = vpack.c.b16 %v1420, %v1412
  %v1629 = vpack.c.b16 %v1421, %v1413
  %v1630 = vpack.c.b16 %v1422, %v1414
  %v1631 = vpack.c.b16 %v1423, %v1415
  %v1632 = vpack.c.b16 %v1424, %v1416
  %v1633 = vpack.c.b16 %v1425, %v1417
  %v1634 = vpack.c.b16 %v1434, %v1426
  %v1635 = vpack.c.b16 %v1435, %v1427
  %v1636 = vpack.c.b16 %v1436, %v1428
  %v1637 = vpack.c.b16 %v1437, %v1429
  %v1638 = vpack.c.b16 %v1438, %v1430
  %v1639 = vpack.c.b16 %v1439, %v1431
  %v1640 = vpack.c.b16 %v1440, %v1432
  %v1641 = vpack.c.b16 %v1441, %v1433
  %v1642 = vpack.c.b16 %v1450, %v1442
  %v1643 = vpack.c.b16 %v1451, %v1443
  %v1644 = vpack.c.b16 %v1452, %v1444
  %v1645 = vpack.c.b16 %v1453, %v1445
  %v1646 = vpack.c.b16 %v1454, %v1446
  %v1647 = vpack.c.b16 %v1455, %v1447
  %v1648 = vpack.c.b16 %v1456, %v1448
  %v1649 = vpack.c.b16 %v1457, %v1449
  %v1650 = vpack.c.b16 %v1466, %v1458
  %v1651 = vpack.c.b16 %v1467, %v1459
  %v1652 = vpack.c.b16 %v1468, %v1460
  %v1653 = vpack.c.b16 %v1469, %v1461
  %v1654 = vpack.c.b16 %v1470, %v1462
  %v1655 = vpack.c.b16 %v1471, %v1463
  %v1656 = vpack.c.b16 %v1472, %v1464
  %v1657 = vpack.c.b16 %v1473, %v1465
  %v1658 = vpack.c.b16 %v1482, %v1474
  %v1659 = vpack.c.b16 %v1483, %v1475
  %v1660 = vpack.c.b16 %v1484, %v1476
  %v1661 = vpack.c.b16 %v1485, %v1477
  %v1662 = vpack.c.b16 %v1486, %v1478
  %v1663 = vpack.c.b16 %v1487, %v1479
  %v1664 = vpack.c.b16 %v1488, %v1480
  %v1665 = vpack.c.b16 %v1489, %v1481
  %v1666 = vpack.c.b16 %v1498, %v1490
  %v1667 = vpack.c.b16 %v1499, %v1491
  %v1668 = vpack.c.b16 %v1500, %v1492
  %v1669 = vpack.c.b16 %v1501, %v1493
  %v1670 = vpack.c.b16 %v1502, %v1494
  %v1671 = vpack.c.b16 %v1503, %v1495
  %v1672 = vpack.c.b16 %v1504, %v1496
  %v1673 = vpack.c.b16 %v1505, %v1497
  %v1674 = vpack.c.b16 %v1514, %v1506
  %v1675 = vpack.c.b16 %v1515, %v1507
  %v1676 = vpack.c.b16 %v1516, %v1508
  %v1677 = vpack.c.b16 %v1517, %v1509
  %v1678 = vpack.c.b16 %v1518, %v1510
  %v1679 = vpack.c.b16 %v1519, %v1511
  %v1680 = vpack.c.b16 %v1520, %v1512
  %v1681 = vpack.c.b16 %v1521, %v1513
  %v1682 = vpack.c.b16 %v1530, %v1522
  %v1683 = vpack.c.b16 %v1531, %v1523
  %v1684 = vpack.c.b16 %v1532, %v1524
  %v1685 = vpack.c.b16 %v1533, %v1525
  %v1686 = vpack.c.b16 %v1534, %v1526
  %v1687 = vpack.c.b16 %v1535, %v1527
  %v1688 = vpack.c.b16 %v1536, %v1528
  %v1689 = vpack.c.b16 %v1537, %v1529
  %v1690 = vpack.c.b16 %v1546, %v1538
  %v1691 = vpack.c.b16 %v1547, %v1539
  %v1692 = vpack.c.b16 %v1548, %v1540
  %v1693 = vpack.c.b16 %v1549, %v1541
  %v1694 = vpack.c.b16 %v1550, %v1542
  %v1695 = vpack.c.b16 %v1551, %v1543
  %v1696 = vpack.c.b16 %v1552, %v1544
  %v1697 = vpack.c.b16 %v1553, %v1545
  %v1698 = vpack.c.b16 %v1562, %v1554
  %v1699 = vpack.c.b16 %v1563, %v1555
  %v1700 = vpack.c.b16 %v1564, %v1556
  %v1701 = vpack.c.b16 %v1565, %v1557
  %v1702 = vpack.c.b16 %v1566, %v1558
  %v1703 = vpack.c.b16 %v1567, %v1559
  %v1704 = vpack.c.b16 %v1568, %v1560
  %v1705 = vpack.c.b16 %v1569, %v1561
  %v1706 = vpack.c.b16 %v1578, %v1570
  %v1707 = vpack.c.b16 %v1579, %v1571
  %v1708 = vpack.c.b16 %v1580, %v1572
  %v1709 = vpack.c.b16 %v1581, %v1573
  %v1710 = vpack.c.b16 %v1582, %v1574
  %v1711 = vpack.c.b16 %v1583, %v1575
  %v1712 = vpack.c.b16 %v1584, %v1576
  %v1713 = vpack.c.b16 %v1585, %v1577
  %1842 = vmatprep.subr.bf16.mxu0 %v1643
  %1843 = vmatpush1.bf16.msra.mxu0 %v1642
  %1844 = vmatprep.subr.bf16.mxu0 %v1635
  %1845 = vmatpush1.bf16.msra.mxu0 %v1634
  %1846 = vmatprep.subr.bf16.mxu0 %v1627
  %1847 = vmatpush1.bf16.msra.mxu0 %v1626
  %1848 = vmatprep.subr.bf16.mxu0 %v1619
  %1849 = vmatpush1.bf16.msra.mxu0 %v1618
  %1850 = vmatprep.subr.bf16.mxu0 %v1611
  %1851 = vmatpush1.bf16.msra.mxu0 %v1610
  %1852 = vmatprep.subr.bf16.mxu0 %v1603
  %1853 = vmatpush1.bf16.msra.mxu0 %v1602
  %1854 = vmatprep.subr.bf16.mxu0 %v1595
  %1855 = vmatpush1.bf16.msra.mxu0 %v1594
  %1856 = vmatprep.subr.bf16.mxu0 %v1587
  %1857 = vmatpush1.bf16.msra.mxu0 %v1586
  %1858 = vmatprep.subr.bf16.mxu0 %v1707
  %1859 = vmatpush2.bf16.msra.mxu0 %v1706
  %1860 = vmatprep.subr.bf16.mxu0 %v1699
  %1861 = vmatpush2.bf16.msra.mxu0 %v1698
  %1862 = vmatprep.subr.bf16.mxu0 %v1691
  %1863 = vmatpush2.bf16.msra.mxu0 %v1690
  %1864 = vmatprep.subr.bf16.mxu0 %v1683
  %1865 = vmatpush2.bf16.msra.mxu0 %v1682
  %1866 = vmatprep.subr.bf16.mxu0 %v1675
  %1867 = vmatpush2.bf16.msra.mxu0 %v1674
  %1868 = vmatprep.subr.bf16.mxu0 %v1667
  %1869 = vmatpush2.bf16.msra.mxu0 %v1666
  %1870 = vmatprep.subr.bf16.mxu0 %v1659
  %1871 = vmatpush2.bf16.msra.mxu0 %v1658
  %1872 = vmatprep.subr.bf16.mxu0 %v1651
  %1873 = vmatpush2.bf16.msra.mxu0 %v1650
  %1874 = vmatprep.mubr.bf16.mxu0 %v1031
  %1875 = vmatmul.mubr.bf16.gmra.mxu0 %v1030
  %v1876 = vpop.f32.mrf.mxu0
  %v1877 = vadd.f32 %v1165, %v1876
  %v1878 = vpop.f32.mrf.mxu0
  %v1879 = vadd.f32 %v1169, %v1878
  %v1880 = vpop.f32.mrf.mxu0
  %v1881 = vpop.f32.mrf.mxu0
  %1882 = vdwg.mxu0
  %1883 = vmatprep.subr.bf16.mxu0 %v1645
  %1884 = vmatpush1.bf16.msra.mxu0 %v1644
  %1885 = vmatprep.subr.bf16.mxu0 %v1637
  %1886 = vmatpush1.bf16.msra.mxu0 %v1636
  %1887 = vmatprep.subr.bf16.mxu0 %v1629
  %1888 = vmatpush1.bf16.msra.mxu0 %v1628
  %1889 = vmatprep.subr.bf16.mxu0 %v1621
  %1890 = vmatpush1.bf16.msra.mxu0 %v1620
  %1891 = vmatprep.subr.bf16.mxu0 %v1613
  %1892 = vmatpush1.bf16.msra.mxu0 %v1612
  %1893 = vmatprep.subr.bf16.mxu0 %v1605
  %1894 = vmatpush1.bf16.msra.mxu0 %v1604
  %1895 = vmatprep.subr.bf16.mxu0 %v1597
  %1896 = vmatpush1.bf16.msra.mxu0 %v1596
  %1897 = vmatprep.subr.bf16.mxu0 %v1589
  %1898 = vmatpush1.bf16.msra.mxu0 %v1588
  %1899 = vmatprep.subr.bf16.mxu0 %v1709
  %1900 = vmatpush2.bf16.msra.mxu0 %v1708
  %1901 = vmatprep.subr.bf16.mxu0 %v1701
  %1902 = vmatpush2.bf16.msra.mxu0 %v1700
  %1903 = vmatprep.subr.bf16.mxu0 %v1693
  %1904 = vmatpush2.bf16.msra.mxu0 %v1692
  %1905 = vmatprep.subr.bf16.mxu0 %v1685
  %1906 = vmatpush2.bf16.msra.mxu0 %v1684
  %1907 = vmatprep.subr.bf16.mxu0 %v1677
  %1908 = vmatpush2.bf16.msra.mxu0 %v1676
  %1909 = vmatprep.subr.bf16.mxu0 %v1669
  %1910 = vmatpush2.bf16.msra.mxu0 %v1668
  %1911 = vmatprep.subr.bf16.mxu0 %v1661
  %1912 = vmatpush2.bf16.msra.mxu0 %v1660
  %1913 = vmatprep.subr.bf16.mxu0 %v1653
  %1914 = vmatpush2.bf16.msra.mxu0 %v1652
  %1915 = vmatprep.mubr.bf16.mxu0 %v1031
  %1916 = vmatmul.mubr.bf16.gmra.mxu0 %v1030
  %v1917 = vpop.f32.mrf.mxu0
  %v1918 = vadd.f32 %v1173, %v1917
  %v1919 = vpop.f32.mrf.mxu0
  %v1920 = vadd.f32 %v1177, %v1919
  %v1921 = vpop.f32.mrf.mxu0
  %v1922 = vpop.f32.mrf.mxu0
  %1923 = vdwg.mxu0
  %1924 = vmatprep.subr.bf16.mxu0 %v1647
  %1925 = vmatpush1.bf16.msra.mxu0 %v1646
  %1926 = vmatprep.subr.bf16.mxu0 %v1639
  %1927 = vmatpush1.bf16.msra.mxu0 %v1638
  %1928 = vmatprep.subr.bf16.mxu0 %v1631
  %1929 = vmatpush1.bf16.msra.mxu0 %v1630
  %1930 = vmatprep.subr.bf16.mxu0 %v1623
  %1931 = vmatpush1.bf16.msra.mxu0 %v1622
  %1932 = vmatprep.subr.bf16.mxu0 %v1615
  %1933 = vmatpush1.bf16.msra.mxu0 %v1614
  %1934 = vmatprep.subr.bf16.mxu0 %v1607
  %1935 = vmatpush1.bf16.msra.mxu0 %v1606
  %1936 = vmatprep.subr.bf16.mxu0 %v1599
  %1937 = vmatpush1.bf16.msra.mxu0 %v1598
  %1938 = vmatprep.subr.bf16.mxu0 %v1591
  %1939 = vmatpush1.bf16.msra.mxu0 %v1590
  %1940 = vmatprep.subr.bf16.mxu0 %v1711
  %1941 = vmatpush2.bf16.msra.mxu0 %v1710
  %1942 = vmatprep.subr.bf16.mxu0 %v1703
  %1943 = vmatpush2.bf16.msra.mxu0 %v1702
  %1944 = vmatprep.subr.bf16.mxu0 %v1695
  %1945 = vmatpush2.bf16.msra.mxu0 %v1694
  %1946 = vmatprep.subr.bf16.mxu0 %v1687
  %1947 = vmatpush2.bf16.msra.mxu0 %v1686
  %1948 = vmatprep.subr.bf16.mxu0 %v1679
  %1949 = vmatpush2.bf16.msra.mxu0 %v1678
  %1950 = vmatprep.subr.bf16.mxu0 %v1671
  %1951 = vmatpush2.bf16.msra.mxu0 %v1670
  %1952 = vmatprep.subr.bf16.mxu0 %v1663
  %1953 = vmatpush2.bf16.msra.mxu0 %v1662
  %1954 = vmatprep.subr.bf16.mxu0 %v1655
  %1955 = vmatpush2.bf16.msra.mxu0 %v1654
  %1956 = vmatprep.mubr.bf16.mxu0 %v1031
  %1957 = vmatmul.mubr.bf16.gmra.mxu0 %v1030
  %v1958 = vpop.f32.mrf.mxu0
  %v1959 = vadd.f32 %v1181, %v1958
  %v1960 = vpop.f32.mrf.mxu0
  %v1961 = vadd.f32 %v1185, %v1960
  %v1962 = vpop.f32.mrf.mxu0
  %v1963 = vpop.f32.mrf.mxu0
  %1964 = vdwg.mxu0
  %1965 = vmatprep.subr.bf16.mxu0 %v1649
  %1966 = vmatpush1.bf16.msra.mxu0 %v1648
  %1967 = vmatprep.subr.bf16.mxu0 %v1641
  %1968 = vmatpush1.bf16.msra.mxu0 %v1640
  %1969 = vmatprep.subr.bf16.mxu0 %v1633
  %1970 = vmatpush1.bf16.msra.mxu0 %v1632
  %1971 = vmatprep.subr.bf16.mxu0 %v1625
  %1972 = vmatpush1.bf16.msra.mxu0 %v1624
  %1973 = vmatprep.subr.bf16.mxu0 %v1617
  %1974 = vmatpush1.bf16.msra.mxu0 %v1616
  %1975 = vmatprep.subr.bf16.mxu0 %v1609
  %1976 = vmatpush1.bf16.msra.mxu0 %v1608
  %1977 = vmatprep.subr.bf16.mxu0 %v1601
  %1978 = vmatpush1.bf16.msra.mxu0 %v1600
  %1979 = vmatprep.subr.bf16.mxu0 %v1593
  %1980 = vmatpush1.bf16.msra.mxu0 %v1592
  %1981 = vmatprep.subr.bf16.mxu0 %v1713
  %1982 = vmatpush2.bf16.msra.mxu0 %v1712
  %1983 = vmatprep.subr.bf16.mxu0 %v1705
  %1984 = vmatpush2.bf16.msra.mxu0 %v1704
  %1985 = vmatprep.subr.bf16.mxu0 %v1697
  %1986 = vmatpush2.bf16.msra.mxu0 %v1696
  %1987 = vmatprep.subr.bf16.mxu0 %v1689
  %1988 = vmatpush2.bf16.msra.mxu0 %v1688
  %1989 = vmatprep.subr.bf16.mxu0 %v1681
  %1990 = vmatpush2.bf16.msra.mxu0 %v1680
  %1991 = vmatprep.subr.bf16.mxu0 %v1673
  %1992 = vmatpush2.bf16.msra.mxu0 %v1672
  %1993 = vmatprep.subr.bf16.mxu0 %v1665
  %1994 = vmatpush2.bf16.msra.mxu0 %v1664
  %1995 = vmatprep.subr.bf16.mxu0 %v1657
  %1996 = vmatpush2.bf16.msra.mxu0 %v1656
  %1997 = vmatprep.mubr.bf16.mxu0 %v1031
  %1998 = vmatmul.mubr.bf16.gmra.mxu0 %v1030
  %v1999 = vpop.f32.mrf.mxu0
  %v2000 = vadd.f32 %v1189, %v1999
  %v2001 = vpop.f32.mrf.mxu0
  %v2002 = vadd.f32 %v1193, %v2001
  %v2003 = vpop.f32.mrf.mxu0
  %v2004 = vpop.f32.mrf.mxu0
  %2005 = vdwg.mxu0
  %v2006 = vmax.f32 %v1877, 0.0
  %v2007 = vmax.f32 %v1879, 0.0
  %v2008 = vmax.f32 %v1918, 0.0
  %v2009 = vmax.f32 %v1920, 0.0
  %v2010 = vmax.f32 %v1959, 0.0
  %v2011 = vmax.f32 %v1961, 0.0
  %v2012 = vmax.f32 %v2000, 0.0
  %v2013 = vmax.f32 %v2002, 0.0
  %v2014 = vpack.c.bf16 %v2006, %v2006
  %v2015 = vpack.c.bf16 %v2007, %v2007
  %v2016 = vpack.c.bf16 %v2008, %v2008
  %v2017 = vpack.c.bf16 %v2009, %v2009
  %v2018 = vpack.c.bf16 %v2010, %v2010
  %v2019 = vpack.c.bf16 %v2011, %v2011
  %v2020 = vpack.c.bf16 %v2012, %v2012
  %v2021 = vpack.c.bf16 %v2013, %v2013
  %v2022 = vld [vmem:[%s6] sm:$0xf]
  %v2023 = vld [vmem:[%s6 + $0x4] sm:$0xf]
  %v2024 = vld [vmem:[%s6 + $0x8] sm:$0xf]
  %v2025 = vld [vmem:[%s6 + $0xc] sm:$0xf]
  %v2026 = vld [vmem:[%s6 + $0x10] sm:$0xf]
  %v2027 = vld [vmem:[%s6 + $0x14] sm:$0xf]
  %v2028 = vld [vmem:[%s6 + $0x18] sm:$0xf]
  %v2029 = vld [vmem:[%s6 + $0x1c] sm:$0xf]
  %v2030 = vld [vmem:[%s6 + $0x20] sm:$0xf]
  %v2031 = vld [vmem:[%s6 + $0x24] sm:$0xf]
  %v2032 = vld [vmem:[%s6 + $0x28] sm:$0xf]
  %v2033 = vld [vmem:[%s6 + $0x2c] sm:$0xf]
  %v2034 = vld [vmem:[%s6 + $0x30] sm:$0xf]
  %v2035 = vld [vmem:[%s6 + $0x34] sm:$0xf]
  %v2036 = vld [vmem:[%s6 + $0x38] sm:$0xf]
  %v2037 = vld [vmem:[%s6 + $0x3c] sm:$0xf]
  %v2038 = vld [vmem:[%s6 + $0x40] sm:$0xf]
  %v2039 = vld [vmem:[%s6 + $0x44] sm:$0xf]
  %v2040 = vld [vmem:[%s6 + $0x48] sm:$0xf]
  %v2041 = vld [vmem:[%s6 + $0x4c] sm:$0xf]
  %v2042 = vld [vmem:[%s6 + $0x50] sm:$0xf]
  %v2043 = vld [vmem:[%s6 + $0x54] sm:$0xf]
  %v2044 = vld [vmem:[%s6 + $0x58] sm:$0xf]
  %v2045 = vld [vmem:[%s6 + $0x5c] sm:$0xf]
  %v2046 = vld [vmem:[%s6 + $0x60] sm:$0xf]
  %v2047 = vld [vmem:[%s6 + $0x64] sm:$0xf]
  %v2048 = vld [vmem:[%s6 + $0x68] sm:$0xf]
  %v2049 = vld [vmem:[%s6 + $0x6c] sm:$0xf]
  %v2050 = vld [vmem:[%s6 + $0x70] sm:$0xf]
  %v2051 = vld [vmem:[%s6 + $0x74] sm:$0xf]
  %v2052 = vld [vmem:[%s6 + $0x78] sm:$0xf]
  %v2053 = vld [vmem:[%s6 + $0x7c] sm:$0xf]
  %v2054 = vld [vmem:[%s6 + $0x80] sm:$0xf]
  %v2055 = vld [vmem:[%s6 + $0x84] sm:$0xf]
  %v2056 = vld [vmem:[%s6 + $0x88] sm:$0xf]
  %v2057 = vld [vmem:[%s6 + $0x8c] sm:$0xf]
  %v2058 = vld [vmem:[%s6 + $0x90] sm:$0xf]
  %v2059 = vld [vmem:[%s6 + $0x94] sm:$0xf]
  %v2060 = vld [vmem:[%s6 + $0x98] sm:$0xf]
  %v2061 = vld [vmem:[%s6 + $0x9c] sm:$0xf]
  %v2062 = vld [vmem:[%s6 + $0xa0] sm:$0xf]
  %v2063 = vld [vmem:[%s6 + $0xa4] sm:$0xf]
  %v2064 = vld [vmem:[%s6 + $0xa8] sm:$0xf]
  %v2065 = vld [vmem:[%s6 + $0xac] sm:$0xf]
  %v2066 = vld [vmem:[%s6 + $0xb0] sm:$0xf]
  %v2067 = vld [vmem:[%s6 + $0xb4] sm:$0xf]
  %v2068 = vld [vmem:[%s6 + $0xb8] sm:$0xf]
  %v2069 = vld [vmem:[%s6 + $0xbc] sm:$0xf]
  %v2070 = vld [vmem:[%s6 + $0xc0] sm:$0xf]
  %v2071 = vld [vmem:[%s6 + $0xc4] sm:$0xf]
  %v2072 = vld [vmem:[%s6 + $0xc8] sm:$0xf]
  %v2073 = vld [vmem:[%s6 + $0xcc] sm:$0xf]
  %v2074 = vld [vmem:[%s6 + $0xd0] sm:$0xf]
  %v2075 = vld [vmem:[%s6 + $0xd4] sm:$0xf]
  %v2076 = vld [vmem:[%s6 + $0xd8] sm:$0xf]
  %v2077 = vld [vmem:[%s6 + $0xdc] sm:$0xf]
  %v2078 = vld [vmem:[%s6 + $0xe0] sm:$0xf]
  %v2079 = vld [vmem:[%s6 + $0xe4] sm:$0xf]
  %v2080 = vld [vmem:[%s6 + $0xe8] sm:$0xf]
  %v2081 = vld [vmem:[%s6 + $0xec] sm:$0xf]
  %v2082 = vld [vmem:[%s6 + $0xf0] sm:$0xf]
  %v2083 = vld [vmem:[%s6 + $0xf4] sm:$0xf]
  %v2084 = vld [vmem:[%s6 + $0xf8] sm:$0xf]
  %v2085 = vld [vmem:[%s6 + $0xfc] sm:$0xf]
  %v2086 = vld [vmem:[%s6 + $0x100] sm:$0xf]
  %v2087 = vld [vmem:[%s6 + $0x104] sm:$0xf]
  %v2088 = vld [vmem:[%s6 + $0x108] sm:$0xf]
  %v2089 = vld [vmem:[%s6 + $0x10c] sm:$0xf]
  %v2090 = vld [vmem:[%s6 + $0x110] sm:$0xf]
  %v2091 = vld [vmem:[%s6 + $0x114] sm:$0xf]
  %v2092 = vld [vmem:[%s6 + $0x118] sm:$0xf]
  %v2093 = vld [vmem:[%s6 + $0x11c] sm:$0xf]
  %v2094 = vld [vmem:[%s6 + $0x120] sm:$0xf]
  %v2095 = vld [vmem:[%s6 + $0x124] sm:$0xf]
  %v2096 = vld [vmem:[%s6 + $0x128] sm:$0xf]
  %v2097 = vld [vmem:[%s6 + $0x12c] sm:$0xf]
  %v2098 = vld [vmem:[%s6 + $0x130] sm:$0xf]
  %v2099 = vld [vmem:[%s6 + $0x134] sm:$0xf]
  %v2100 = vld [vmem:[%s6 + $0x138] sm:$0xf]
  %v2101 = vld [vmem:[%s6 + $0x13c] sm:$0xf]
  %v2102 = vld [vmem:[%s6 + $0x140] sm:$0xf]
  %v2103 = vld [vmem:[%s6 + $0x144] sm:$0xf]
  %v2104 = vld [vmem:[%s6 + $0x148] sm:$0xf]
  %v2105 = vld [vmem:[%s6 + $0x14c] sm:$0xf]
  %v2106 = vld [vmem:[%s6 + $0x150] sm:$0xf]
  %v2107 = vld [vmem:[%s6 + $0x154] sm:$0xf]
  %v2108 = vld [vmem:[%s6 + $0x158] sm:$0xf]
  %v2109 = vld [vmem:[%s6 + $0x15c] sm:$0xf]
  %v2110 = vld [vmem:[%s6 + $0x160] sm:$0xf]
  %v2111 = vld [vmem:[%s6 + $0x164] sm:$0xf]
  %v2112 = vld [vmem:[%s6 + $0x168] sm:$0xf]
  %v2113 = vld [vmem:[%s6 + $0x16c] sm:$0xf]
  %v2114 = vld [vmem:[%s6 + $0x170] sm:$0xf]
  %v2115 = vld [vmem:[%s6 + $0x174] sm:$0xf]
  %v2116 = vld [vmem:[%s6 + $0x178] sm:$0xf]
  %v2117 = vld [vmem:[%s6 + $0x17c] sm:$0xf]
  %v2118 = vld [vmem:[%s6 + $0x180] sm:$0xf]
  %v2119 = vld [vmem:[%s6 + $0x184] sm:$0xf]
  %v2120 = vld [vmem:[%s6 + $0x188] sm:$0xf]
  %v2121 = vld [vmem:[%s6 + $0x18c] sm:$0xf]
  %v2122 = vld [vmem:[%s6 + $0x190] sm:$0xf]
  %v2123 = vld [vmem:[%s6 + $0x194] sm:$0xf]
  %v2124 = vld [vmem:[%s6 + $0x198] sm:$0xf]
  %v2125 = vld [vmem:[%s6 + $0x19c] sm:$0xf]
  %v2126 = vld [vmem:[%s6 + $0x1a0] sm:$0xf]
  %v2127 = vld [vmem:[%s6 + $0x1a4] sm:$0xf]
  %v2128 = vld [vmem:[%s6 + $0x1a8] sm:$0xf]
  %v2129 = vld [vmem:[%s6 + $0x1ac] sm:$0xf]
  %v2130 = vld [vmem:[%s6 + $0x1b0] sm:$0xf]
  %v2131 = vld [vmem:[%s6 + $0x1b4] sm:$0xf]
  %v2132 = vld [vmem:[%s6 + $0x1b8] sm:$0xf]
  %v2133 = vld [vmem:[%s6 + $0x1bc] sm:$0xf]
  %v2134 = vld [vmem:[%s6 + $0x1c0] sm:$0xf]
  %v2135 = vld [vmem:[%s6 + $0x1c4] sm:$0xf]
  %v2136 = vld [vmem:[%s6 + $0x1c8] sm:$0xf]
  %v2137 = vld [vmem:[%s6 + $0x1cc] sm:$0xf]
  %v2138 = vld [vmem:[%s6 + $0x1d0] sm:$0xf]
  %v2139 = vld [vmem:[%s6 + $0x1d4] sm:$0xf]
  %v2140 = vld [vmem:[%s6 + $0x1d8] sm:$0xf]
  %v2141 = vld [vmem:[%s6 + $0x1dc] sm:$0xf]
  %v2142 = vld [vmem:[%s6 + $0x1e0] sm:$0xf]
  %v2143 = vld [vmem:[%s6 + $0x1e4] sm:$0xf]
  %v2144 = vld [vmem:[%s6 + $0x1e8] sm:$0xf]
  %v2145 = vld [vmem:[%s6 + $0x1ec] sm:$0xf]
  %v2146 = vld [vmem:[%s6 + $0x1f0] sm:$0xf]
  %v2147 = vld [vmem:[%s6 + $0x1f4] sm:$0xf]
  %v2148 = vld [vmem:[%s6 + $0x1f8] sm:$0xf]
  %v2149 = vld [vmem:[%s6 + $0x1fc] sm:$0xf]
  %v2150 = vld [vmem:[%s7] sm:$0x1]
  %v2152 = vlaneseq
  %v2153 = vshrl.u32 %v2152, 7
  %v2154 = vsub.s32 0, %v2153
  %v2155 = vrot.slane %v2150, %v2154
  %v2285 = vunpack.c.l.b16 %v2022
  %v2286 = vunpack.c.l.b16 %v2023
  %v2287 = vunpack.c.l.b16 %v2024
  %v2288 = vunpack.c.l.b16 %v2025
  %v2289 = vunpack.c.l.b16 %v2026
  %v2290 = vunpack.c.l.b16 %v2027
  %v2291 = vunpack.c.l.b16 %v2028
  %v2292 = vunpack.c.l.b16 %v2029
  %v2293 = vunpack.c.l.b16 %v2030
  %v2294 = vunpack.c.l.b16 %v2031
  %v2295 = vunpack.c.l.b16 %v2032
  %v2296 = vunpack.c.l.b16 %v2033
  %v2297 = vunpack.c.l.b16 %v2034
  %v2298 = vunpack.c.l.b16 %v2035
  %v2299 = vunpack.c.l.b16 %v2036
  %v2300 = vunpack.c.l.b16 %v2037
  %v2301 = vunpack.c.l.b16 %v2038
  %v2302 = vunpack.c.l.b16 %v2039
  %v2303 = vunpack.c.l.b16 %v2040
  %v2304 = vunpack.c.l.b16 %v2041
  %v2305 = vunpack.c.l.b16 %v2042
  %v2306 = vunpack.c.l.b16 %v2043
  %v2307 = vunpack.c.l.b16 %v2044
  %v2308 = vunpack.c.l.b16 %v2045
  %v2309 = vunpack.c.l.b16 %v2046
  %v2310 = vunpack.c.l.b16 %v2047
  %v2311 = vunpack.c.l.b16 %v2048
  %v2312 = vunpack.c.l.b16 %v2049
  %v2313 = vunpack.c.l.b16 %v2050
  %v2314 = vunpack.c.l.b16 %v2051
  %v2315 = vunpack.c.l.b16 %v2052
  %v2316 = vunpack.c.l.b16 %v2053
  %v2317 = vunpack.c.l.b16 %v2054
  %v2318 = vunpack.c.l.b16 %v2055
  %v2319 = vunpack.c.l.b16 %v2056
  %v2320 = vunpack.c.l.b16 %v2057
  %v2321 = vunpack.c.l.b16 %v2058
  %v2322 = vunpack.c.l.b16 %v2059
  %v2323 = vunpack.c.l.b16 %v2060
  %v2324 = vunpack.c.l.b16 %v2061
  %v2325 = vunpack.c.l.b16 %v2062
  %v2326 = vunpack.c.l.b16 %v2063
  %v2327 = vunpack.c.l.b16 %v2064
  %v2328 = vunpack.c.l.b16 %v2065
  %v2329 = vunpack.c.l.b16 %v2066
  %v2330 = vunpack.c.l.b16 %v2067
  %v2331 = vunpack.c.l.b16 %v2068
  %v2332 = vunpack.c.l.b16 %v2069
  %v2333 = vunpack.c.l.b16 %v2070
  %v2334 = vunpack.c.l.b16 %v2071
  %v2335 = vunpack.c.l.b16 %v2072
  %v2336 = vunpack.c.l.b16 %v2073
  %v2337 = vunpack.c.l.b16 %v2074
  %v2338 = vunpack.c.l.b16 %v2075
  %v2339 = vunpack.c.l.b16 %v2076
  %v2340 = vunpack.c.l.b16 %v2077
  %v2341 = vunpack.c.l.b16 %v2078
  %v2342 = vunpack.c.l.b16 %v2079
  %v2343 = vunpack.c.l.b16 %v2080
  %v2344 = vunpack.c.l.b16 %v2081
  %v2345 = vunpack.c.l.b16 %v2082
  %v2346 = vunpack.c.l.b16 %v2083
  %v2347 = vunpack.c.l.b16 %v2084
  %v2348 = vunpack.c.l.b16 %v2085
  %v2349 = vunpack.c.l.b16 %v2086
  %v2350 = vunpack.c.l.b16 %v2087
  %v2351 = vunpack.c.l.b16 %v2088
  %v2352 = vunpack.c.l.b16 %v2089
  %v2353 = vunpack.c.l.b16 %v2090
  %v2354 = vunpack.c.l.b16 %v2091
  %v2355 = vunpack.c.l.b16 %v2092
  %v2356 = vunpack.c.l.b16 %v2093
  %v2357 = vunpack.c.l.b16 %v2094
  %v2358 = vunpack.c.l.b16 %v2095
  %v2359 = vunpack.c.l.b16 %v2096
  %v2360 = vunpack.c.l.b16 %v2097
  %v2361 = vunpack.c.l.b16 %v2098
  %v2362 = vunpack.c.l.b16 %v2099
  %v2363 = vunpack.c.l.b16 %v2100
  %v2364 = vunpack.c.l.b16 %v2101
  %v2365 = vunpack.c.l.b16 %v2102
  %v2366 = vunpack.c.l.b16 %v2103
  %v2367 = vunpack.c.l.b16 %v2104
  %v2368 = vunpack.c.l.b16 %v2105
  %v2369 = vunpack.c.l.b16 %v2106
  %v2370 = vunpack.c.l.b16 %v2107
  %v2371 = vunpack.c.l.b16 %v2108
  %v2372 = vunpack.c.l.b16 %v2109
  %v2373 = vunpack.c.l.b16 %v2110
  %v2374 = vunpack.c.l.b16 %v2111
  %v2375 = vunpack.c.l.b16 %v2112
  %v2376 = vunpack.c.l.b16 %v2113
  %v2377 = vunpack.c.l.b16 %v2114
  %v2378 = vunpack.c.l.b16 %v2115
  %v2379 = vunpack.c.l.b16 %v2116
  %v2380 = vunpack.c.l.b16 %v2117
  %v2381 = vunpack.c.l.b16 %v2118
  %v2382 = vunpack.c.l.b16 %v2119
  %v2383 = vunpack.c.l.b16 %v2120
  %v2384 = vunpack.c.l.b16 %v2121
  %v2385 = vunpack.c.l.b16 %v2122
  %v2386 = vunpack.c.l.b16 %v2123
  %v2387 = vunpack.c.l.b16 %v2124
  %v2388 = vunpack.c.l.b16 %v2125
  %v2389 = vunpack.c.l.b16 %v2126
  %v2390 = vunpack.c.l.b16 %v2127
  %v2391 = vunpack.c.l.b16 %v2128
  %v2392 = vunpack.c.l.b16 %v2129
  %v2393 = vunpack.c.l.b16 %v2130
  %v2394 = vunpack.c.l.b16 %v2131
  %v2395 = vunpack.c.l.b16 %v2132
  %v2396 = vunpack.c.l.b16 %v2133
  %v2397 = vunpack.c.l.b16 %v2134
  %v2398 = vunpack.c.l.b16 %v2135
  %v2399 = vunpack.c.l.b16 %v2136
  %v2400 = vunpack.c.l.b16 %v2137
  %v2401 = vunpack.c.l.b16 %v2138
  %v2402 = vunpack.c.l.b16 %v2139
  %v2403 = vunpack.c.l.b16 %v2140
  %v2404 = vunpack.c.l.b16 %v2141
  %v2405 = vunpack.c.l.b16 %v2142
  %v2406 = vunpack.c.l.b16 %v2143
  %v2407 = vunpack.c.l.b16 %v2144
  %v2408 = vunpack.c.l.b16 %v2145
  %v2409 = vunpack.c.l.b16 %v2146
  %v2410 = vunpack.c.l.b16 %v2147
  %v2411 = vunpack.c.l.b16 %v2148
  %v2412 = vunpack.c.l.b16 %v2149
  %v2413 = vpack.c.b16 %v2286, %v2285
  %v2414 = vpack.c.b16 %v2288, %v2287
  %v2415 = vpack.c.b16 %v2290, %v2289
  %v2416 = vpack.c.b16 %v2292, %v2291
  %v2417 = vpack.c.b16 %v2294, %v2293
  %v2418 = vpack.c.b16 %v2296, %v2295
  %v2419 = vpack.c.b16 %v2298, %v2297
  %v2420 = vpack.c.b16 %v2300, %v2299
  %v2421 = vpack.c.b16 %v2302, %v2301
  %v2422 = vpack.c.b16 %v2304, %v2303
  %v2423 = vpack.c.b16 %v2306, %v2305
  %v2424 = vpack.c.b16 %v2308, %v2307
  %v2425 = vpack.c.b16 %v2310, %v2309
  %v2426 = vpack.c.b16 %v2312, %v2311
  %v2427 = vpack.c.b16 %v2314, %v2313
  %v2428 = vpack.c.b16 %v2316, %v2315
  %v2429 = vpack.c.b16 %v2318, %v2317
  %v2430 = vpack.c.b16 %v2320, %v2319
  %v2431 = vpack.c.b16 %v2322, %v2321
  %v2432 = vpack.c.b16 %v2324, %v2323
  %v2433 = vpack.c.b16 %v2326, %v2325
  %v2434 = vpack.c.b16 %v2328, %v2327
  %v2435 = vpack.c.b16 %v2330, %v2329
  %v2436 = vpack.c.b16 %v2332, %v2331
  %v2437 = vpack.c.b16 %v2334, %v2333
  %v2438 = vpack.c.b16 %v2336, %v2335
  %v2439 = vpack.c.b16 %v2338, %v2337
  %v2440 = vpack.c.b16 %v2340, %v2339
  %v2441 = vpack.c.b16 %v2342, %v2341
  %v2442 = vpack.c.b16 %v2344, %v2343
  %v2443 = vpack.c.b16 %v2346, %v2345
  %v2444 = vpack.c.b16 %v2348, %v2347
  %v2445 = vpack.c.b16 %v2350, %v2349
  %v2446 = vpack.c.b16 %v2352, %v2351
  %v2447 = vpack.c.b16 %v2354, %v2353
  %v2448 = vpack.c.b16 %v2356, %v2355
  %v2449 = vpack.c.b16 %v2358, %v2357
  %v2450 = vpack.c.b16 %v2360, %v2359
  %v2451 = vpack.c.b16 %v2362, %v2361
  %v2452 = vpack.c.b16 %v2364, %v2363
  %v2453 = vpack.c.b16 %v2366, %v2365
  %v2454 = vpack.c.b16 %v2368, %v2367
  %v2455 = vpack.c.b16 %v2370, %v2369
  %v2456 = vpack.c.b16 %v2372, %v2371
  %v2457 = vpack.c.b16 %v2374, %v2373
  %v2458 = vpack.c.b16 %v2376, %v2375
  %v2459 = vpack.c.b16 %v2378, %v2377
  %v2460 = vpack.c.b16 %v2380, %v2379
  %v2461 = vpack.c.b16 %v2382, %v2381
  %v2462 = vpack.c.b16 %v2384, %v2383
  %v2463 = vpack.c.b16 %v2386, %v2385
  %v2464 = vpack.c.b16 %v2388, %v2387
  %v2465 = vpack.c.b16 %v2390, %v2389
  %v2466 = vpack.c.b16 %v2392, %v2391
  %v2467 = vpack.c.b16 %v2394, %v2393
  %v2468 = vpack.c.b16 %v2396, %v2395
  %v2469 = vpack.c.b16 %v2398, %v2397
  %v2470 = vpack.c.b16 %v2400, %v2399
  %v2471 = vpack.c.b16 %v2402, %v2401
  %v2472 = vpack.c.b16 %v2404, %v2403
  %v2473 = vpack.c.b16 %v2406, %v2405
  %v2474 = vpack.c.b16 %v2408, %v2407
  %v2475 = vpack.c.b16 %v2410, %v2409
  %v2476 = vpack.c.b16 %v2412, %v2411
  %2541 = vmatprep.subr.bf16.mxu0 0
  %2542 = vmatpush1.bf16.msra.mxu0 %v2420
  %2543 = vmatprep.subr.bf16.mxu0 0
  %2544 = vmatpush1.bf16.msra.mxu0 %v2419
  %2545 = vmatprep.subr.bf16.mxu0 0
  %2546 = vmatpush1.bf16.msra.mxu0 %v2418
  %2547 = vmatprep.subr.bf16.mxu0 0
  %2548 = vmatpush1.bf16.msra.mxu0 %v2417
  %2549 = vmatprep.subr.bf16.mxu0 0
  %2550 = vmatpush1.bf16.msra.mxu0 %v2416
  %2551 = vmatprep.subr.bf16.mxu0 0
  %2552 = vmatpush1.bf16.msra.mxu0 %v2415
  %2553 = vmatprep.subr.bf16.mxu0 0
  %2554 = vmatpush1.bf16.msra.mxu0 %v2414
  %2555 = vmatprep.subr.bf16.mxu0 0
  %2556 = vmatpush1.bf16.msra.mxu0 %v2413
  %2557 = vmatprep.subr.bf16.mxu0 0
  %2558 = vmatpush2.bf16.msra.mxu0 %v2428
  %2559 = vmatprep.subr.bf16.mxu0 0
  %2560 = vmatpush2.bf16.msra.mxu0 %v2427
  %2561 = vmatprep.subr.bf16.mxu0 0
  %2562 = vmatpush2.bf16.msra.mxu0 %v2426
  %2563 = vmatprep.subr.bf16.mxu0 0
  %2564 = vmatpush2.bf16.msra.mxu0 %v2425
  %2565 = vmatprep.subr.bf16.mxu0 0
  %2566 = vmatpush2.bf16.msra.mxu0 %v2424
  %2567 = vmatprep.subr.bf16.mxu0 0
  %2568 = vmatpush2.bf16.msra.mxu0 %v2423
  %2569 = vmatprep.subr.bf16.mxu0 0
  %2570 = vmatpush2.bf16.msra.mxu0 %v2422
  %2571 = vmatprep.subr.bf16.mxu0 0
  %2572 = vmatpush2.bf16.msra.mxu0 %v2421
  %2573 = vmatprep.mubr.bf16.mxu0 %v2015
  %2574 = vmatmul.mubr.bf16.gmra.mxu0 %v2014
  %v2575 = vpop.f32.mrf.mxu0
  %v2576 = vadd.f32 %v2155, %v2575
  %v2577 = vpop.f32.mrf.mxu0
  %v2578 = vpop.f32.mrf.mxu0
  %v2579 = vpop.f32.mrf.mxu0
  %2580 = vdwg.mxu0
  %2581 = vmatprep.subr.bf16.mxu0 0
  %2582 = vmatpush1.bf16.msra.mxu0 %v2436
  %2583 = vmatprep.subr.bf16.mxu0 0
  %2584 = vmatpush1.bf16.msra.mxu0 %v2435
  %2585 = vmatprep.subr.bf16.mxu0 0
  %2586 = vmatpush1.bf16.msra.mxu0 %v2434
  %2587 = vmatprep.subr.bf16.mxu0 0
  %2588 = vmatpush1.bf16.msra.mxu0 %v2433
  %2589 = vmatprep.subr.bf16.mxu0 0
  %2590 = vmatpush1.bf16.msra.mxu0 %v2432
  %2591 = vmatprep.subr.bf16.mxu0 0
  %2592 = vmatpush1.bf16.msra.mxu0 %v2431
  %2593 = vmatprep.subr.bf16.mxu0 0
  %2594 = vmatpush1.bf16.msra.mxu0 %v2430
  %2595 = vmatprep.subr.bf16.mxu0 0
  %2596 = vmatpush1.bf16.msra.mxu0 %v2429
  %2597 = vmatprep.subr.bf16.mxu0 0
  %2598 = vmatpush2.bf16.msra.mxu0 %v2444
  %2599 = vmatprep.subr.bf16.mxu0 0
  %2600 = vmatpush2.bf16.msra.mxu0 %v2443
  %2601 = vmatprep.subr.bf16.mxu0 0
  %2602 = vmatpush2.bf16.msra.mxu0 %v2442
  %2603 = vmatprep.subr.bf16.mxu0 0
  %2604 = vmatpush2.bf16.msra.mxu0 %v2441
  %2605 = vmatprep.subr.bf16.mxu0 0
  %2606 = vmatpush2.bf16.msra.mxu0 %v2440
  %2607 = vmatprep.subr.bf16.mxu0 0
  %2608 = vmatpush2.bf16.msra.mxu0 %v2439
  %2609 = vmatprep.subr.bf16.mxu0 0
  %2610 = vmatpush2.bf16.msra.mxu0 %v2438
  %2611 = vmatprep.subr.bf16.mxu0 0
  %2612 = vmatpush2.bf16.msra.mxu0 %v2437
  %2613 = vmatprep.mubr.bf16.mxu0 %v2017
  %2614 = vmatmul.mubr.bf16.gmra.mxu0 %v2016
  %v2615 = vpop.f32.mrf.mxu0
  %v2616 = vadd.f32 %v2576, %v2615
  %v2617 = vpop.f32.mrf.mxu0
  %v2618 = vpop.f32.mrf.mxu0
  %v2619 = vpop.f32.mrf.mxu0
  %2620 = vdwg.mxu0
  %2621 = vmatprep.subr.bf16.mxu0 0
  %2622 = vmatpush1.bf16.msra.mxu0 %v2452
  %2623 = vmatprep.subr.bf16.mxu0 0
  %2624 = vmatpush1.bf16.msra.mxu0 %v2451
  %2625 = vmatprep.subr.bf16.mxu0 0
  %2626 = vmatpush1.bf16.msra.mxu0 %v2450
  %2627 = vmatprep.subr.bf16.mxu0 0
  %2628 = vmatpush1.bf16.msra.mxu0 %v2449
  %2629 = vmatprep.subr.bf16.mxu0 0
  %2630 = vmatpush1.bf16.msra.mxu0 %v2448
  %2631 = vmatprep.subr.bf16.mxu0 0
  %2632 = vmatpush1.bf16.msra.mxu0 %v2447
  %2633 = vmatprep.subr.bf16.mxu0 0
  %2634 = vmatpush1.bf16.msra.mxu0 %v2446
  %2635 = vmatprep.subr.bf16.mxu0 0
  %2636 = vmatpush1.bf16.msra.mxu0 %v2445
  %2637 = vmatprep.subr.bf16.mxu0 0
  %2638 = vmatpush2.bf16.msra.mxu0 %v2460
  %2639 = vmatprep.subr.bf16.mxu0 0
  %2640 = vmatpush2.bf16.msra.mxu0 %v2459
  %2641 = vmatprep.subr.bf16.mxu0 0
  %2642 = vmatpush2.bf16.msra.mxu0 %v2458
  %2643 = vmatprep.subr.bf16.mxu0 0
  %2644 = vmatpush2.bf16.msra.mxu0 %v2457
  %2645 = vmatprep.subr.bf16.mxu0 0
  %2646 = vmatpush2.bf16.msra.mxu0 %v2456
  %2647 = vmatprep.subr.bf16.mxu0 0
  %2648 = vmatpush2.bf16.msra.mxu0 %v2455
  %2649 = vmatprep.subr.bf16.mxu0 0
  %2650 = vmatpush2.bf16.msra.mxu0 %v2454
  %2651 = vmatprep.subr.bf16.mxu0 0
  %2652 = vmatpush2.bf16.msra.mxu0 %v2453
  %2653 = vmatprep.mubr.bf16.mxu0 %v2019
  %2654 = vmatmul.mubr.bf16.gmra.mxu0 %v2018
  %v2655 = vpop.f32.mrf.mxu0
  %v2656 = vadd.f32 %v2616, %v2655
  %v2657 = vpop.f32.mrf.mxu0
  %v2658 = vpop.f32.mrf.mxu0
  %v2659 = vpop.f32.mrf.mxu0
  %2660 = vdwg.mxu0
  %2661 = vmatprep.subr.bf16.mxu0 0
  %2662 = vmatpush1.bf16.msra.mxu0 %v2468
  %2663 = vmatprep.subr.bf16.mxu0 0
  %2664 = vmatpush1.bf16.msra.mxu0 %v2467
  %2665 = vmatprep.subr.bf16.mxu0 0
  %2666 = vmatpush1.bf16.msra.mxu0 %v2466
  %2667 = vmatprep.subr.bf16.mxu0 0
  %2668 = vmatpush1.bf16.msra.mxu0 %v2465
  %2669 = vmatprep.subr.bf16.mxu0 0
  %2670 = vmatpush1.bf16.msra.mxu0 %v2464
  %2671 = vmatprep.subr.bf16.mxu0 0
  %2672 = vmatpush1.bf16.msra.mxu0 %v2463
  %2673 = vmatprep.subr.bf16.mxu0 0
  %2674 = vmatpush1.bf16.msra.mxu0 %v2462
  %2675 = vmatprep.subr.bf16.mxu0 0
  %2676 = vmatpush1.bf16.msra.mxu0 %v2461
  %2677 = vmatprep.subr.bf16.mxu0 0
  %2678 = vmatpush2.bf16.msra.mxu0 %v2476
  %2679 = vmatprep.subr.bf16.mxu0 0
  %2680 = vmatpush2.bf16.msra.mxu0 %v2475
  %2681 = vmatprep.subr.bf16.mxu0 0
  %2682 = vmatpush2.bf16.msra.mxu0 %v2474
  %2683 = vmatprep.subr.bf16.mxu0 0
  %2684 = vmatpush2.bf16.msra.mxu0 %v2473
  %2685 = vmatprep.subr.bf16.mxu0 0
  %2686 = vmatpush2.bf16.msra.mxu0 %v2472
  %2687 = vmatprep.subr.bf16.mxu0 0
  %2688 = vmatpush2.bf16.msra.mxu0 %v2471
  %2689 = vmatprep.subr.bf16.mxu0 0
  %2690 = vmatpush2.bf16.msra.mxu0 %v2470
  %2691 = vmatprep.subr.bf16.mxu0 0
  %2692 = vmatpush2.bf16.msra.mxu0 %v2469
  %2693 = vmatprep.mubr.bf16.mxu0 %v2021
  %2694 = vmatmul.mubr.bf16.gmra.mxu0 %v2020
  %v2695 = vpop.f32.mrf.mxu0
  %v2696 = vadd.f32 %v2656, %v2695
  %v2697 = vpop.f32.mrf.mxu0
  %v2698 = vpop.f32.mrf.mxu0
  %v2699 = vpop.f32.mrf.mxu0
  %2700 = vdwg.mxu0
  %2701 = vst [vmem:[%s8] sm:$0xff] %v2696
  // Predicated region
  $region34: #{fruit_classifier_forward.1} parent=0 // pred_check
    _
  $region35: #{fruit_classifier_forward.1} parent=0 // pred_check_branch
    %2703 = sbr.rel (0) target = $region37
  $region36: #{fruit_classifier_forward.1} parent=0 // pred_region
    _
  $region37: #{fruit_classifier_forward.1} parent=0 // pred_fallthru
    _
  // Predicated region
  $region38: #{fruit_classifier_forward.1} parent=0 // pred_check
    _
  $region39: #{fruit_classifier_forward.1} parent=0 // pred_check_branch
    %2705 = sbr.rel (0) target = $region41
  $region40: #{fruit_classifier_forward.1} parent=0 // pred_region
    _
  $region41: #{fruit_classifier_forward.1} parent=0 // pred_fallthru
    _

</llo_original>
